<compile_context>
chip_gen: v7x
topology: tpu7x:2x2x1
jax: 0.10.0
libtpu: 0.0.40
codegen_flags: <defaults>
</compile_context>

<pallas_src>
import math
from functools import partial

import jax
import jax.numpy as jnp
from jax import lax
from jax.experimental import pallas as pl
from jax.experimental.pallas import tpu as pltpu


def _fused_attn_kernel(x_ref, w_qkv_ref, b_qkv_ref, w_o_ref, b_o_ref,
                       o_ref, kv_ref, hm_ref, *,
                       n_heads, d_head, q_block, kv_block, n_kv, scale,
                       causal, compute_dtype):
    f32 = jnp.float32
    qi = pl.program_id(1)
    perf_bf16 = jnp.dtype(compute_dtype) != jnp.dtype(f32)

    # ---- K/V projection for the whole sequence, once per batch element. ----
    # Full-width (Skv, D) @ (D, D) matmuls; results cached in VMEM scratch and
    # reused by every query block of this batch element (qi axis = arbitrary).
    @pl.when(qi == 0)
    def _fill_kv_cache():
        wk = w_qkv_ref[1]                            # (D, D)
        wv = w_qkv_ref[2]
        bk = b_qkv_ref[1]                            # (1, D) f32
        bv = b_qkv_ref[2]
        for kv in range(n_kv):
            k0 = kv * kv_block
            xk = x_ref[0, k0:k0 + kv_block, :]       # (Skv, D)
            kv_ref[0, k0:k0 + kv_block, :] = (
                jnp.dot(xk, wk, preferred_element_type=f32) + bk
            ).astype(kv_ref.dtype)
            kv_ref[1, k0:k0 + kv_block, :] = (
                jnp.dot(xk, wv, preferred_element_type=f32) + bv
            ).astype(kv_ref.dtype)

    # ---- Q projection for this query block (full width: K = N = D). ----
    # The 1/sqrt(dh) scale is folded into q once (O(Sq*D) VPU work).
    q0 = pl.multiple_of(qi * q_block, q_block)
    xq = x_ref[0, pl.ds(q0, q_block), :]             # (Sq, D)
    q_all = ((jnp.dot(xq, w_qkv_ref[0], preferred_element_type=f32)
              + b_qkv_ref[0]) * scale).astype(compute_dtype)     # (Sq, D)

    # ---- Flash attention: online softmax over KV blocks, per head. --------
    m = [jnp.full((q_block, 1), -jnp.inf, f32) for _ in range(n_heads)]
    l = [jnp.zeros((q_block, 1), f32) for _ in range(n_heads)]
    acc = [jnp.zeros((q_block, d_head), f32) for _ in range(n_heads)]

    for kv in range(n_kv):
        k0 = kv * kv_block
        k_all = kv_ref[0, k0:k0 + kv_block, :]       # (Skv, D) compute_dtype
        v_all = kv_ref[1, k0:k0 + kv_block, :]

        if causal:
            # Diagonal is always unmasked, so no row is ever fully masked in
            # its first KV block -> no -inf/-inf NaN path is reachable.
            row = q0 + lax.broadcasted_iota(jnp.int32, (q_block, kv_block), 0)
            col = k0 + lax.broadcasted_iota(jnp.int32, (q_block, kv_block), 1)
            masked = col > row

        for h in range(n_heads):
            sl = slice(h * d_head, (h + 1) * d_head)
            # QK^T contracting dh (no explicit transpose materialized).
            s = lax.dot_general(q_all[:, sl], k_all[:, sl],
                                (((1,), (1,)), ((), ())),
                                preferred_element_type=f32)      # (Sq, Skv)
            if causal:
                s = jnp.where(masked, -jnp.inf, s)

            m_new = jnp.maximum(m[h], jnp.max(s, axis=-1, keepdims=True))
            alpha = jnp.exp(m[h] - m_new)                        # (Sq, 1) f32
            z = s - m_new
            # bf16 exp on the perf path (v6e/v7x EUP); strict f32 otherwise.
            p = jnp.exp(z.astype(compute_dtype) if perf_bf16 else z)
            l[h] = alpha * l[h] + jnp.sum(p.astype(f32), axis=-1, keepdims=True)
            acc[h] = alpha * acc[h] + jnp.dot(
                p.astype(compute_dtype), v_all[:, sl],
                preferred_element_type=f32)
            m[h] = m_new

    # ---- Delayed softmax normalization on (Sq, dh); head-major store. -----
    for h in range(n_heads):
        o_h = acc[h] * pl.reciprocal(l[h], approx=perf_bf16)
        hm_ref[:, h * d_head:(h + 1) * d_head] = o_h.astype(hm_ref.dtype)

    # ---- Single K = D out_proj for this query block (w_out resident). -----
    y = jnp.dot(hm_ref[...], w_o_ref[...], preferred_element_type=f32)
    o_ref[0] = (y + b_o_ref[...]).astype(o_ref.dtype)


def _pick_block(total: int, target: int) -> int:
    """Largest block <= target that divides `total` with an 8-aligned sublane
    extent, falling back to the whole axis."""
    if total <= target:
        return total
    for cand in range(min(target, total), 7, -1):
        if total % cand == 0 and cand % 8 == 0:
            return cand
    return total


def self_attention(x, w_in, b_in, w_out, b_out, *, n_heads, causal=False,
                   compute_dtype=jnp.bfloat16, q_block_target=256,
                   kv_block_target=512):
    """Fused self-attention.

    x: (B, S, D). Weights follow the nn.Linear convention:
      w_in: (3D, D), b_in: (3D,), w_out: (D, D), b_out: (D,).
    """
    B, S, D = x.shape
    H = n_heads
    assert D % H == 0, "embd_dim must be divisible by n_heads"
    dh = D // H
    scale = 1.0 / math.sqrt(dh)

    q_block = _pick_block(S, q_block_target)
    kv_block = _pick_block(S, kv_block_target)
    n_q = S // q_block
    n_kv = S // kv_block

    # nn.Linear: y = x @ W.T + b.  Split into per-projection (D, D) matrices;
    # their columns are already head-major (head h <-> cols [h*dh, (h+1)*dh)).
    w_qkv = jnp.stack([w_in[:D].T, w_in[D:2 * D].T, w_in[2 * D:].T]
                      ).astype(compute_dtype)                 # (3, D, D)
    b_qkv = b_in.reshape(3, 1, D).astype(jnp.float32)         # (3, 1, D)
    w_o = w_out.T.astype(compute_dtype)                       # (D, D)
    b_o = b_out.reshape(1, D).astype(jnp.float32)             # (1, D)
    x_c = x.astype(compute_dtype)

    itemsize = jnp.dtype(compute_dtype).itemsize
    out_itemsize = jnp.dtype(x.dtype).itemsize

    # Rough resident-VMEM estimate -> explicit limit (>= default 32 MiB,
    # capped at 64 MiB so it is valid on every generation incl. v7x).
    est = (2 * S * D * itemsize                               # x (dbl-buf)
           + 2 * 3 * D * D * itemsize + 2 * D * D * itemsize  # weights
           + 2 * q_block * D * out_itemsize                   # out block
           + 2 * S * D * itemsize                             # K/V cache
           + q_block * D * itemsize                           # head-major scratch
           + 4 * q_block * D                                  # q_all (f32)
           + 2 * kv_block * D * itemsize                      # k/v block views
           + 4 * q_block * kv_block                           # logits block
           + 4 * q_block * (D + 2 * H)                        # acc / m / l
           + 4 * 5 * D)                                       # biases
    vmem_limit = int(min(64 * 2**20, max(32 * 2**20, int(1.5 * est))))

    cost = pl.CostEstimate(
        flops=int(6 * B * S * D * D            # in_proj
                  + 4 * B * S * S * D          # QK^T + PV (all heads)
                  + 2 * B * S * D * D),        # out_proj
        transcendentals=int(B * H * S * S),
        bytes_accessed=int(x_c.size * itemsize + 4 * D * D * itemsize
                           + B * S * D * out_itemsize))

    kernel = partial(_fused_attn_kernel, n_heads=H, d_head=dh,
                     q_block=q_block, kv_block=kv_block, n_kv=n_kv,
                     scale=scale, causal=causal, compute_dtype=compute_dtype)

    return pl.pallas_call(
        kernel,
        out_shape=jax.ShapeDtypeStruct((B, S, D), x.dtype),
        grid_spec=pltpu.PrefetchScalarGridSpec(
            num_scalar_prefetch=0,
            grid=(B, n_q),
            in_specs=[
                pl.BlockSpec((1, S, D), lambda b, q: (b, 0, 0)),   # x (per-b resident)
                pl.BlockSpec((3, D, D), lambda b, q: (0, 0, 0)),   # w_qkv (resident)
                pl.BlockSpec((3, 1, D), lambda b, q: (0, 0, 0)),   # b_qkv (resident)
                pl.BlockSpec((D, D), lambda b, q: (0, 0)),         # w_out (resident)
                pl.BlockSpec((1, D), lambda b, q: (0, 0)),         # b_out (resident)
            ],
            out_specs=pl.BlockSpec((1, q_block, D), lambda b, q: (b, q, 0)),
            scratch_shapes=[
                pltpu.VMEM((2, S, D), compute_dtype),    # per-batch K/V cache
                pltpu.VMEM((q_block, D), compute_dtype), # head-major attn out
            ],
        ),
        # Query-block axis must be "arbitrary": the K/V cache filled at qi==0
        # is reused by the remaining query blocks of the same batch element.
        compiler_params=pltpu.CompilerParams(
            dimension_semantics=("parallel", "arbitrary"),
            vmem_limit_bytes=vmem_limit),
        cost_estimate=cost,
    )(x_c, w_qkv, b_qkv, w_o, b_o)


def self_attention_ref(x, w_in, b_in, w_out, b_out, *, n_heads, causal=False):
    """Pure-JAX reference mirroring the PyTorch module."""
    B, S, D = x.shape
    dh = D // n_heads
    qkv = x @ w_in.T + b_in
    q, k, v = jnp.split(qkv, 3, axis=-1)
    q = q.reshape(B, S, n_heads, dh).transpose(0, 2, 1, 3)
    k = k.reshape(B, S, n_heads, dh).transpose(0, 2, 1, 3)
    v = v.reshape(B, S, n_heads, dh).transpose(0, 2, 1, 3)
    w = jnp.einsum("bhqd,bhkd->bhqk", q, k)
    if causal:
        mask = jnp.triu(jnp.ones((S, S), dtype=bool), 1)
        w = jnp.where(mask, -jnp.inf, w)
    w = w / math.sqrt(dh)
    w = jax.nn.softmax(w, axis=-1)
    o = jnp.einsum("bhqk,bhkd->bhqd", w, v)
    o = o.transpose(0, 2, 1, 3).reshape(B, S, D)
    return o @ w_out.T + b_out


if __name__ == "__main__":
    # Small shapes consistent with the module: batch=2, seq=8, embd=32, heads=4
    B, S, D, H = 2, 8, 32, 4

    key = jax.random.PRNGKey(0)
    kx, k1, k2, k3, k4 = jax.random.split(key, 5)

    x = jax.random.normal(kx, (B, S, D), dtype=jnp.float32)

    # Deterministic nn.Linear-style init: U(-1/sqrt(in), 1/sqrt(in))
    bound = 1.0 / math.sqrt(D)
    w_in = jax.random.uniform(k1, (3 * D, D), jnp.float32, -bound, bound)
    b_in = jax.random.uniform(k2, (3 * D,), jnp.float32, -bound, bound)
    w_out = jax.random.uniform(k3, (D, D), jnp.float32, -bound, bound)
    b_out = jax.random.uniform(k4, (D,), jnp.float32, -bound, bound)

    # Perf path: bf16 MXU operands + bf16 exp, f32 stats/accumulation.
    out_bf16 = jax.block_until_ready(
        self_attention(x, w_in, b_in, w_out, b_out, n_heads=H, causal=False,
                       compute_dtype=jnp.bfloat16))
    ref = self_attention_ref(x, w_in, b_in, w_out, b_out, n_heads=H,
                             causal=False)
    assert out_bf16.shape == (B, S, D)
    assert jnp.allclose(out_bf16, ref, atol=5e-2, rtol=5e-2), \
        "bf16 kernel mismatch vs reference"

    # Strict path: f32 operands + causal mask, tight tolerance.
    out_f32 = jax.block_until_ready(
        self_attention(x, w_in, b_in, w_out, b_out, n_heads=H, causal=True,
                       compute_dtype=jnp.float32))
    ref_c = self_attention_ref(x, w_in, b_in, w_out, b_out, n_heads=H,
                               causal=True)
    assert jnp.allclose(out_f32, ref_c, atol=1e-5, rtol=1e-5), \
        "f32 kernel mismatch vs reference"

    print("KERNEL_OK")
</pallas_src>

<mosaic_0001>
module attributes {stable_mosaic.version = 11 : i64} {
  func.func @_fused_attn_kernel(%arg0: i32, %arg1: i32, %arg2: memref<1x8x32xbf16, #tpu.memory_space<vmem>>, %arg3: memref<3x32x32xbf16, #tpu.memory_space<vmem>>, %arg4: memref<3x1x32xf32, #tpu.memory_space<vmem>>, %arg5: memref<32x32xbf16, #tpu.memory_space<vmem>>, %arg6: memref<1x32xf32, #tpu.memory_space<vmem>>, %arg7: memref<1x8x32xf32, #tpu.memory_space<vmem>>, %arg8: memref<2x8x32xbf16, #tpu.memory_space<vmem>>, %arg9: memref<8x32xbf16, #tpu.memory_space<vmem>>) attributes {dimension_semantics = [#tpu.dimension_semantics<parallel>, #tpu.dimension_semantics<arbitrary>], iteration_bounds = array<i64: 2, 1>, scalar_prefetch = 0 : i64, scratch_operands = 2 : i64, tpu.core_type = #tpu.core_type<tc>, window_params = [{transform_indices = @transform_0, window_bounds = array<i64: 1, 8, 32>}, {pipeline_mode = #tpu.pipeline_mode<synchronous>, transform_indices = @transform_1, window_bounds = array<i64: 3, 32, 32>}, {pipeline_mode = #tpu.pipeline_mode<synchronous>, transform_indices = @transform_2, window_bounds = array<i64: 3, 1, 32>}, {pipeline_mode = #tpu.pipeline_mode<synchronous>, transform_indices = @transform_3, window_bounds = array<i64: 32, 32>}, {pipeline_mode = #tpu.pipeline_mode<synchronous>, transform_indices = @transform_4, window_bounds = array<i64: 1, 32>}, {transform_indices = @transform_5, window_bounds = array<i64: 1, 8, 32>}]} {
    %c0_i32 = arith.constant 0 : i32
    %0 = arith.cmpi eq, %arg1, %c0_i32 : i32
    %1 = arith.extui %0 : i1 to i32
    %c0_i32_0 = arith.constant 0 : i32
    %2 = arith.cmpi ne, %1, %c0_i32_0 : i32
    scf.if %2 {
      %c1_57 = arith.constant 1 : index
      %c0_58 = arith.constant 0 : index
      %c0_59 = arith.constant 0 : index
      %151 = vector.load %arg3[%c1_57, %c0_58, %c0_59] : memref<3x32x32xbf16, #tpu.memory_space<vmem>>, vector<1x32x32xbf16>
      %152 = vector.shape_cast %151 : vector<1x32x32xbf16> to vector<32x32xbf16>
      %c2 = arith.constant 2 : index
      %c0_60 = arith.constant 0 : index
      %c0_61 = arith.constant 0 : index
      %153 = vector.load %arg3[%c2, %c0_60, %c0_61] : memref<3x32x32xbf16, #tpu.memory_space<vmem>>, vector<1x32x32xbf16>
      %154 = vector.shape_cast %153 : vector<1x32x32xbf16> to vector<32x32xbf16>
      %c1_62 = arith.constant 1 : index
      %c0_63 = arith.constant 0 : index
      %c0_64 = arith.constant 0 : index
      %155 = vector.load %arg4[%c1_62, %c0_63, %c0_64] : memref<3x1x32xf32, #tpu.memory_space<vmem>>, vector<1x1x32xf32>
      %156 = vector.shape_cast %155 : vector<1x1x32xf32> to vector<1x32xf32>
      %c2_65 = arith.constant 2 : index
      %c0_66 = arith.constant 0 : index
      %c0_67 = arith.constant 0 : index
      %157 = vector.load %arg4[%c2_65, %c0_66, %c0_67] : memref<3x1x32xf32, #tpu.memory_space<vmem>>, vector<1x1x32xf32>
      %158 = vector.shape_cast %157 : vector<1x1x32xf32> to vector<1x32xf32>
      %c0_68 = arith.constant 0 : index
      %c0_69 = arith.constant 0 : index
      %c0_70 = arith.constant 0 : index
      %159 = vector.load %arg2[%c0_68, %c0_69, %c0_70] : memref<1x8x32xbf16, #tpu.memory_space<vmem>>, vector<1x8x32xbf16>
      %160 = vector.shape_cast %159 : vector<1x8x32xbf16> to vector<8x32xbf16>
      %cst_71 = arith.constant dense<0.000000e+00> : vector<8x32xf32>
      %161 = tpu.matmul %160, %152, %cst_71 {dimension_numbers = #tpu.dot_dimension_numbers<[1], [0], [0], [1], [0, 0, 1, 1], [], []>} : vector<8x32xbf16>, vector<32x32xbf16>, vector<8x32xf32> -> vector<8x32xf32>
      %162 = vector.broadcast %156 : vector<1x32xf32> to vector<8x32xf32>
      %163 = arith.addf %161, %162 : vector<8x32xf32>
      %164 = arith.truncf %163 : vector<8x32xf32> to vector<8x32xbf16>
      %c0_72 = arith.constant 0 : index
      %c0_73 = arith.constant 0 : index
      %c0_74 = arith.constant 0 : index
      %165 = vector.load %arg8[%c0_72, %c0_73, %c0_74] : memref<2x8x32xbf16, #tpu.memory_space<vmem>>, vector<1x8x32xbf16>
      %166 = vector.shape_cast %165 : vector<1x8x32xbf16> to vector<8x32xbf16>
      %167 = vector.shape_cast %164 : vector<8x32xbf16> to vector<1x8x32xbf16>
      tpu.vector_store %arg8[%c0_72, %c0_73, %c0_74], %167 {strides = array<i32>} : memref<2x8x32xbf16, #tpu.memory_space<vmem>>, vector<1x8x32xbf16>,
      %cst_75 = arith.constant dense<0.000000e+00> : vector<8x32xf32>
      %168 = tpu.matmul %160, %154, %cst_75 {dimension_numbers = #tpu.dot_dimension_numbers<[1], [0], [0], [1], [0, 0, 1, 1], [], []>} : vector<8x32xbf16>, vector<32x32xbf16>, vector<8x32xf32> -> vector<8x32xf32>
      %169 = vector.broadcast %158 : vector<1x32xf32> to vector<8x32xf32>
      %170 = arith.addf %168, %169 : vector<8x32xf32>
      %171 = arith.truncf %170 : vector<8x32xf32> to vector<8x32xbf16>
      %c1_76 = arith.constant 1 : index
      %c0_77 = arith.constant 0 : index
      %c0_78 = arith.constant 0 : index
      %172 = vector.load %arg8[%c1_76, %c0_77, %c0_78] : memref<2x8x32xbf16, #tpu.memory_space<vmem>>, vector<1x8x32xbf16>
      %173 = vector.shape_cast %172 : vector<1x8x32xbf16> to vector<8x32xbf16>
      %174 = vector.shape_cast %171 : vector<8x32xbf16> to vector<1x8x32xbf16>
      tpu.vector_store %arg8[%c1_76, %c0_77, %c0_78], %174 {strides = array<i32>} : memref<2x8x32xbf16, #tpu.memory_space<vmem>>, vector<1x8x32xbf16>,
    } else {
    }
    %c8_i32 = arith.constant 8 : i32
    %3 = arith.muli %arg1, %c8_i32 : i32
    %4 = tpu.assume_multiple %3, 8 : i32
    %c0 = arith.constant 0 : index
    %5 = arith.index_cast %4 : i32 to index
    %c0_1 = arith.constant 0 : index
    %6 = vector.load %arg2[%c0, %5, %c0_1] : memref<1x8x32xbf16, #tpu.memory_space<vmem>>, vector<1x8x32xbf16>
    %7 = vector.shape_cast %6 : vector<1x8x32xbf16> to vector<8x32xbf16>
    %c0_2 = arith.constant 0 : index
    %c0_3 = arith.constant 0 : index
    %c0_4 = arith.constant 0 : index
    %8 = vector.load %arg3[%c0_2, %c0_3, %c0_4] : memref<3x32x32xbf16, #tpu.memory_space<vmem>>, vector<1x32x32xbf16>
    %9 = vector.shape_cast %8 : vector<1x32x32xbf16> to vector<32x32xbf16>
    %cst = arith.constant dense<0.000000e+00> : vector<8x32xf32>
    %10 = tpu.matmul %7, %9, %cst {dimension_numbers = #tpu.dot_dimension_numbers<[1], [0], [0], [1], [0, 0, 1, 1], [], []>} : vector<8x32xbf16>, vector<32x32xbf16>, vector<8x32xf32> -> vector<8x32xf32>
    %c0_5 = arith.constant 0 : index
    %c0_6 = arith.constant 0 : index
    %c0_7 = arith.constant 0 : index
    %11 = vector.load %arg4[%c0_5, %c0_6, %c0_7] : memref<3x1x32xf32, #tpu.memory_space<vmem>>, vector<1x1x32xf32>
    %12 = vector.shape_cast %11 : vector<1x1x32xf32> to vector<1x32xf32>
    %13 = vector.broadcast %12 : vector<1x32xf32> to vector<8x32xf32>
    %14 = arith.addf %10, %13 : vector<8x32xf32>
    %cst_8 = arith.constant 0.353553385 : f32
    %15 = vector.broadcast %cst_8 : f32 to vector<8x32xf32>
    %16 = arith.mulf %14, %15 : vector<8x32xf32>
    %17 = arith.truncf %16 : vector<8x32xf32> to vector<8x32xbf16>
    %cst_9 = arith.constant 0xFF800000 : f32
    %18 = vector.broadcast %cst_9 : f32 to vector<8x1xf32>
    %cst_10 = arith.constant 0xFF800000 : f32
    %19 = vector.broadcast %cst_10 : f32 to vector<8x1xf32>
    %cst_11 = arith.constant 0xFF800000 : f32
    %20 = vector.broadcast %cst_11 : f32 to vector<8x1xf32>
    %cst_12 = arith.constant 0xFF800000 : f32
    %21 = vector.broadcast %cst_12 : f32 to vector<8x1xf32>
    %cst_13 = arith.constant 0.000000e+00 : f32
    %22 = vector.broadcast %cst_13 : f32 to vector<8x1xf32>
    %cst_14 = arith.constant 0.000000e+00 : f32
    %23 = vector.broadcast %cst_14 : f32 to vector<8x1xf32>
    %cst_15 = arith.constant 0.000000e+00 : f32
    %24 = vector.broadcast %cst_15 : f32 to vector<8x1xf32>
    %cst_16 = arith.constant 0.000000e+00 : f32
    %25 = vector.broadcast %cst_16 : f32 to vector<8x1xf32>
    %cst_17 = arith.constant 0.000000e+00 : f32
    %26 = vector.broadcast %cst_17 : f32 to vector<8x8xf32>
    %cst_18 = arith.constant 0.000000e+00 : f32
    %27 = vector.broadcast %cst_18 : f32 to vector<8x8xf32>
    %cst_19 = arith.constant 0.000000e+00 : f32
    %28 = vector.broadcast %cst_19 : f32 to vector<8x8xf32>
    %cst_20 = arith.constant 0.000000e+00 : f32
    %29 = vector.broadcast %cst_20 : f32 to vector<8x8xf32>
    %c0_21 = arith.constant 0 : index
    %c0_22 = arith.constant 0 : index
    %c0_23 = arith.constant 0 : index
    %30 = vector.load %arg8[%c0_21, %c0_22, %c0_23] : memref<2x8x32xbf16, #tpu.memory_space<vmem>>, vector<1x8x32xbf16>
    %31 = vector.shape_cast %30 : vector<1x8x32xbf16> to vector<8x32xbf16>
    %c1 = arith.constant 1 : index
    %c0_24 = arith.constant 0 : index
    %c0_25 = arith.constant 0 : index
    %32 = vector.load %arg8[%c1, %c0_24, %c0_25] : memref<2x8x32xbf16, #tpu.memory_space<vmem>>, vector<1x8x32xbf16>
    %33 = vector.shape_cast %32 : vector<1x8x32xbf16> to vector<8x32xbf16>
    %34 = vector.extract_strided_slice %17 {offsets = [0, 0], sizes = [8, 8], strides = [1, 1]} : vector<8x32xbf16> to vector<8x8xbf16>
    %35 = vector.extract_strided_slice %31 {offsets = [0, 0], sizes = [8, 8], strides = [1, 1]} : vector<8x32xbf16> to vector<8x8xbf16>
    %cst_26 = arith.constant dense<0.000000e+00> : vector<8x8xf32>
    %36 = tpu.matmul %34, %35, %cst_26 {dimension_numbers = #tpu.dot_dimension_numbers<[1], [1], [0], [0], [0, 0, 1, 0], [], []>} : vector<8x8xbf16>, vector<8x8xbf16>, vector<8x8xf32> -> vector<8x8xf32>
    %cst_27 = arith.constant dense<0xFF800000> : vector<8xf32>
    %37 = vector.multi_reduction <maximumf>, %36, %cst_27 [1] : vector<8x8xf32> to vector<8xf32>
    %38 = vector.shape_cast %37 : vector<8xf32> to vector<8x1xf32>
    %39 = arith.maximumf %18, %38 : vector<8x1xf32>
    %40 = arith.subf %18, %39 : vector<8x1xf32>
    %41 = math.exp %40 : vector<8x1xf32>
    %42 = vector.broadcast %39 : vector<8x1xf32> to vector<8x8xf32>
    %43 = arith.subf %36, %42 : vector<8x8xf32>
    %44 = arith.truncf %43 : vector<8x8xf32> to vector<8x8xbf16>
    %45 = math.exp %44 : vector<8x8xbf16>
    %46 = arith.mulf %41, %22 : vector<8x1xf32>
    %47 = arith.extf %45 : vector<8x8xbf16> to vector<8x8xf32>
    %cst_28 = arith.constant dense<0.000000e+00> : vector<8xf32>
    %48 = vector.multi_reduction <add>, %47, %cst_28 [1] : vector<8x8xf32> to vector<8xf32>
    %49 = vector.shape_cast %48 : vector<8xf32> to vector<8x1xf32>
    %50 = arith.addf %46, %49 : vector<8x1xf32>
    %51 = vector.broadcast %41 : vector<8x1xf32> to vector<8x8xf32>
    %52 = arith.mulf %51, %26 : vector<8x8xf32>
    %53 = vector.extract_strided_slice %33 {offsets = [0, 0], sizes = [8, 8], strides = [1, 1]} : vector<8x32xbf16> to vector<8x8xbf16>
    %cst_29 = arith.constant dense<0.000000e+00> : vector<8x8xf32>
    %54 = tpu.matmul %45, %53, %cst_29 {dimension_numbers = #tpu.dot_dimension_numbers<[1], [0], [0], [1], [0, 0, 1, 1], [], []>} : vector<8x8xbf16>, vector<8x8xbf16>, vector<8x8xf32> -> vector<8x8xf32>
    %55 = arith.addf %52, %54 : vector<8x8xf32>
    %56 = vector.extract_strided_slice %17 {offsets = [0, 8], sizes = [8, 8], strides = [1, 1]} : vector<8x32xbf16> to vector<8x8xbf16>
    %57 = vector.extract_strided_slice %31 {offsets = [0, 8], sizes = [8, 8], strides = [1, 1]} : vector<8x32xbf16> to vector<8x8xbf16>
    %cst_30 = arith.constant dense<0.000000e+00> : vector<8x8xf32>
    %58 = tpu.matmul %56, %57, %cst_30 {dimension_numbers = #tpu.dot_dimension_numbers<[1], [1], [0], [0], [0, 0, 1, 0], [], []>} : vector<8x8xbf16>, vector<8x8xbf16>, vector<8x8xf32> -> vector<8x8xf32>
    %cst_31 = arith.constant dense<0xFF800000> : vector<8xf32>
    %59 = vector.multi_reduction <maximumf>, %58, %cst_31 [1] : vector<8x8xf32> to vector<8xf32>
    %60 = vector.shape_cast %59 : vector<8xf32> to vector<8x1xf32>
    %61 = arith.maximumf %19, %60 : vector<8x1xf32>
    %62 = arith.subf %19, %61 : vector<8x1xf32>
    %63 = math.exp %62 : vector<8x1xf32>
    %64 = vector.broadcast %61 : vector<8x1xf32> to vector<8x8xf32>
    %65 = arith.subf %58, %64 : vector<8x8xf32>
    %66 = arith.truncf %65 : vector<8x8xf32> to vector<8x8xbf16>
    %67 = math.exp %66 : vector<8x8xbf16>
    %68 = arith.mulf %63, %23 : vector<8x1xf32>
    %69 = arith.extf %67 : vector<8x8xbf16> to vector<8x8xf32>
    %cst_32 = arith.constant dense<0.000000e+00> : vector<8xf32>
    %70 = vector.multi_reduction <add>, %69, %cst_32 [1] : vector<8x8xf32> to vector<8xf32>
    %71 = vector.shape_cast %70 : vector<8xf32> to vector<8x1xf32>
    %72 = arith.addf %68, %71 : vector<8x1xf32>
    %73 = vector.broadcast %63 : vector<8x1xf32> to vector<8x8xf32>
    %74 = arith.mulf %73, %27 : vector<8x8xf32>
    %75 = vector.extract_strided_slice %33 {offsets = [0, 8], sizes = [8, 8], strides = [1, 1]} : vector<8x32xbf16> to vector<8x8xbf16>
    %cst_33 = arith.constant dense<0.000000e+00> : vector<8x8xf32>
    %76 = tpu.matmul %67, %75, %cst_33 {dimension_numbers = #tpu.dot_dimension_numbers<[1], [0], [0], [1], [0, 0, 1, 1], [], []>} : vector<8x8xbf16>, vector<8x8xbf16>, vector<8x8xf32> -> vector<8x8xf32>
    %77 = arith.addf %74, %76 : vector<8x8xf32>
    %78 = vector.extract_strided_slice %17 {offsets = [0, 16], sizes = [8, 8], strides = [1, 1]} : vector<8x32xbf16> to vector<8x8xbf16>
    %79 = vector.extract_strided_slice %31 {offsets = [0, 16], sizes = [8, 8], strides = [1, 1]} : vector<8x32xbf16> to vector<8x8xbf16>
    %cst_34 = arith.constant dense<0.000000e+00> : vector<8x8xf32>
    %80 = tpu.matmul %78, %79, %cst_34 {dimension_numbers = #tpu.dot_dimension_numbers<[1], [1], [0], [0], [0, 0, 1, 0], [], []>} : vector<8x8xbf16>, vector<8x8xbf16>, vector<8x8xf32> -> vector<8x8xf32>
    %cst_35 = arith.constant dense<0xFF800000> : vector<8xf32>
    %81 = vector.multi_reduction <maximumf>, %80, %cst_35 [1] : vector<8x8xf32> to vector<8xf32>
    %82 = vector.shape_cast %81 : vector<8xf32> to vector<8x1xf32>
    %83 = arith.maximumf %20, %82 : vector<8x1xf32>
    %84 = arith.subf %20, %83 : vector<8x1xf32>
    %85 = math.exp %84 : vector<8x1xf32>
    %86 = vector.broadcast %83 : vector<8x1xf32> to vector<8x8xf32>
    %87 = arith.subf %80, %86 : vector<8x8xf32>
    %88 = arith.truncf %87 : vector<8x8xf32> to vector<8x8xbf16>
    %89 = math.exp %88 : vector<8x8xbf16>
    %90 = arith.mulf %85, %24 : vector<8x1xf32>
    %91 = arith.extf %89 : vector<8x8xbf16> to vector<8x8xf32>
    %cst_36 = arith.constant dense<0.000000e+00> : vector<8xf32>
    %92 = vector.multi_reduction <add>, %91, %cst_36 [1] : vector<8x8xf32> to vector<8xf32>
    %93 = vector.shape_cast %92 : vector<8xf32> to vector<8x1xf32>
    %94 = arith.addf %90, %93 : vector<8x1xf32>
    %95 = vector.broadcast %85 : vector<8x1xf32> to vector<8x8xf32>
    %96 = arith.mulf %95, %28 : vector<8x8xf32>
    %97 = vector.extract_strided_slice %33 {offsets = [0, 16], sizes = [8, 8], strides = [1, 1]} : vector<8x32xbf16> to vector<8x8xbf16>
    %cst_37 = arith.constant dense<0.000000e+00> : vector<8x8xf32>
    %98 = tpu.matmul %89, %97, %cst_37 {dimension_numbers = #tpu.dot_dimension_numbers<[1], [0], [0], [1], [0, 0, 1, 1], [], []>} : vector<8x8xbf16>, vector<8x8xbf16>, vector<8x8xf32> -> vector<8x8xf32>
    %99 = arith.addf %96, %98 : vector<8x8xf32>
    %100 = vector.extract_strided_slice %17 {offsets = [0, 24], sizes = [8, 8], strides = [1, 1]} : vector<8x32xbf16> to vector<8x8xbf16>
    %101 = vector.extract_strided_slice %31 {offsets = [0, 24], sizes = [8, 8], strides = [1, 1]} : vector<8x32xbf16> to vector<8x8xbf16>
    %cst_38 = arith.constant dense<0.000000e+00> : vector<8x8xf32>
    %102 = tpu.matmul %100, %101, %cst_38 {dimension_numbers = #tpu.dot_dimension_numbers<[1], [1], [0], [0], [0, 0, 1, 0], [], []>} : vector<8x8xbf16>, vector<8x8xbf16>, vector<8x8xf32> -> vector<8x8xf32>
    %cst_39 = arith.constant dense<0xFF800000> : vector<8xf32>
    %103 = vector.multi_reduction <maximumf>, %102, %cst_39 [1] : vector<8x8xf32> to vector<8xf32>
    %104 = vector.shape_cast %103 : vector<8xf32> to vector<8x1xf32>
    %105 = arith.maximumf %21, %104 : vector<8x1xf32>
    %106 = arith.subf %21, %105 : vector<8x1xf32>
    %107 = math.exp %106 : vector<8x1xf32>
    %108 = vector.broadcast %105 : vector<8x1xf32> to vector<8x8xf32>
    %109 = arith.subf %102, %108 : vector<8x8xf32>
    %110 = arith.truncf %109 : vector<8x8xf32> to vector<8x8xbf16>
    %111 = math.exp %110 : vector<8x8xbf16>
    %112 = arith.mulf %107, %25 : vector<8x1xf32>
    %113 = arith.extf %111 : vector<8x8xbf16> to vector<8x8xf32>
    %cst_40 = arith.constant dense<0.000000e+00> : vector<8xf32>
    %114 = vector.multi_reduction <add>, %113, %cst_40 [1] : vector<8x8xf32> to vector<8xf32>
    %115 = vector.shape_cast %114 : vector<8xf32> to vector<8x1xf32>
    %116 = arith.addf %112, %115 : vector<8x1xf32>
    %117 = vector.broadcast %107 : vector<8x1xf32> to vector<8x8xf32>
    %118 = arith.mulf %117, %29 : vector<8x8xf32>
    %119 = vector.extract_strided_slice %33 {offsets = [0, 24], sizes = [8, 8], strides = [1, 1]} : vector<8x32xbf16> to vector<8x8xbf16>
    %cst_41 = arith.constant dense<0.000000e+00> : vector<8x8xf32>
    %120 = tpu.matmul %111, %119, %cst_41 {dimension_numbers = #tpu.dot_dimension_numbers<[1], [0], [0], [1], [0, 0, 1, 1], [], []>} : vector<8x8xbf16>, vector<8x8xbf16>, vector<8x8xf32> -> vector<8x8xf32>
    %121 = arith.addf %118, %120 : vector<8x8xf32>
    %122 = tpu.reciprocal %50 {approx = true} : vector<8x1xf32> -> vector<8x1xf32>
    %123 = vector.broadcast %122 : vector<8x1xf32> to vector<8x8xf32>
    %124 = arith.mulf %55, %123 : vector<8x8xf32>
    %125 = arith.truncf %124 : vector<8x8xf32> to vector<8x8xbf16>
    %c0_42 = arith.constant 0 : index
    %c0_43 = arith.constant 0 : index
    %126 = vector.load %arg9[%c0_42, %c0_43] : memref<8x32xbf16, #tpu.memory_space<vmem>>, vector<8x8xbf16>
    tpu.vector_store %arg9[%c0_42, %c0_43], %125 {strides = array<i32>} : memref<8x32xbf16, #tpu.memory_space<vmem>>, vector<8x8xbf16>,
    %127 = tpu.reciprocal %72 {approx = true} : vector<8x1xf32> -> vector<8x1xf32>
    %128 = vector.broadcast %127 : vector<8x1xf32> to vector<8x8xf32>
    %129 = arith.mulf %77, %128 : vector<8x8xf32>
    %130 = arith.truncf %129 : vector<8x8xf32> to vector<8x8xbf16>
    %c0_44 = arith.constant 0 : index
    %c8 = arith.constant 8 : index
    %131 = vector.load %arg9[%c0_44, %c8] : memref<8x32xbf16, #tpu.memory_space<vmem>>, vector<8x8xbf16>
    tpu.vector_store %arg9[%c0_44, %c8], %130 {strides = array<i32>} : memref<8x32xbf16, #tpu.memory_space<vmem>>, vector<8x8xbf16>,
    %132 = tpu.reciprocal %94 {approx = true} : vector<8x1xf32> -> vector<8x1xf32>
    %133 = vector.broadcast %132 : vector<8x1xf32> to vector<8x8xf32>
    %134 = arith.mulf %99, %133 : vector<8x8xf32>
    %135 = arith.truncf %134 : vector<8x8xf32> to vector<8x8xbf16>
    %c0_45 = arith.constant 0 : index
    %c16 = arith.constant 16 : index
    %136 = vector.load %arg9[%c0_45, %c16] : memref<8x32xbf16, #tpu.memory_space<vmem>>, vector<8x8xbf16>
    tpu.vector_store %arg9[%c0_45, %c16], %135 {strides = array<i32>} : memref<8x32xbf16, #tpu.memory_space<vmem>>, vector<8x8xbf16>,
    %137 = tpu.reciprocal %116 {approx = true} : vector<8x1xf32> -> vector<8x1xf32>
    %138 = vector.broadcast %137 : vector<8x1xf32> to vector<8x8xf32>
    %139 = arith.mulf %121, %138 : vector<8x8xf32>
    %140 = arith.truncf %139 : vector<8x8xf32> to vector<8x8xbf16>
    %c0_46 = arith.constant 0 : index
    %c24 = arith.constant 24 : index
    %141 = vector.load %arg9[%c0_46, %c24] : memref<8x32xbf16, #tpu.memory_space<vmem>>, vector<8x8xbf16>
    tpu.vector_store %arg9[%c0_46, %c24], %140 {strides = array<i32>} : memref<8x32xbf16, #tpu.memory_space<vmem>>, vector<8x8xbf16>,
    %c0_47 = arith.constant 0 : index
    %c0_48 = arith.constant 0 : index
    %142 = vector.load %arg9[%c0_47, %c0_48] : memref<8x32xbf16, #tpu.memory_space<vmem>>, vector<8x32xbf16>
    %c0_49 = arith.constant 0 : index
    %c0_50 = arith.constant 0 : index
    %143 = vector.load %arg5[%c0_49, %c0_50] : memref<32x32xbf16, #tpu.memory_space<vmem>>, vector<32x32xbf16>
    %cst_51 = arith.constant dense<0.000000e+00> : vector<8x32xf32>
    %144 = tpu.matmul %142, %143, %cst_51 {dimension_numbers = #tpu.dot_dimension_numbers<[1], [0], [0], [1], [0, 0, 1, 1], [], []>} : vector<8x32xbf16>, vector<32x32xbf16>, vector<8x32xf32> -> vector<8x32xf32>
    %c0_52 = arith.constant 0 : index
    %c0_53 = arith.constant 0 : index
    %145 = vector.load %arg6[%c0_52, %c0_53] : memref<1x32xf32, #tpu.memory_space<vmem>>, vector<1x32xf32>
    %146 = vector.broadcast %145 : vector<1x32xf32> to vector<8x32xf32>
    %147 = arith.addf %144, %146 : vector<8x32xf32>
    %c0_54 = arith.constant 0 : index
    %c0_55 = arith.constant 0 : index
    %c0_56 = arith.constant 0 : index
    %148 = vector.load %arg7[%c0_54, %c0_55, %c0_56] : memref<1x8x32xf32, #tpu.memory_space<vmem>>, vector<1x8x32xf32>
    %149 = vector.shape_cast %148 : vector<1x8x32xf32> to vector<8x32xf32>
    %150 = vector.shape_cast %147 : vector<8x32xf32> to vector<1x8x32xf32>
    tpu.vector_store %arg7[%c0_54, %c0_55, %c0_56], %150 {strides = array<i32>} : memref<1x8x32xf32, #tpu.memory_space<vmem>>, vector<1x8x32xf32>,
    return
  }
  func.func @transform_0(%arg0: i32, %arg1: i32) -> (i32, i32, i32) {
    %c0_i32 = arith.constant 0 : i32
    %c0_i32_0 = arith.constant 0 : i32
    %c0_i32_1 = arith.constant 0 : i32
    return %arg0, %c0_i32, %c0_i32_0 : i32, i32, i32
  }
  func.func @transform_1(%arg0: i32, %arg1: i32) -> (i32, i32, i32) {
    %c0_i32 = arith.constant 0 : i32
    %c0_i32_0 = arith.constant 0 : i32
    %c0_i32_1 = arith.constant 0 : i32
    %c0_i32_2 = arith.constant 0 : i32
    return %c0_i32, %c0_i32_0, %c0_i32_1 : i32, i32, i32
  }
  func.func @transform_2(%arg0: i32, %arg1: i32) -> (i32, i32, i32) {
    %c0_i32 = arith.constant 0 : i32
    %c0_i32_0 = arith.constant 0 : i32
    %c0_i32_1 = arith.constant 0 : i32
    %c0_i32_2 = arith.constant 0 : i32
    return %c0_i32, %c0_i32_0, %c0_i32_1 : i32, i32, i32
  }
  func.func @transform_3(%arg0: i32, %arg1: i32) -> (i32, i32) {
    %c0_i32 = arith.constant 0 : i32
    %c0_i32_0 = arith.constant 0 : i32
    %c0_i32_1 = arith.constant 0 : i32
    return %c0_i32, %c0_i32_0 : i32, i32
  }
  func.func @transform_4(%arg0: i32, %arg1: i32) -> (i32, i32) {
    %c0_i32 = arith.constant 0 : i32
    %c0_i32_0 = arith.constant 0 : i32
    %c0_i32_1 = arith.constant 0 : i32
    return %c0_i32, %c0_i32_0 : i32, i32
  }
  func.func @transform_5(%arg0: i32, %arg1: i32) -> (i32, i32, i32) {
    %c0_i32 = arith.constant 0 : i32
    %c0_i32_0 = arith.constant 0 : i32
    return %arg0, %arg1, %c0_i32 : i32, i32, i32
  }
}

</mosaic_0001>

<llo_original>
// kernel: tpu_custom_call.1
$region0: #{tpu_custom_call.1}
  #allocation0 [shape = 'u32[]', space=smem, size = 0x4, offset = 0x4, fixed_abs, tag = 'smem constant byte address 0x4 - core index']
  #allocation1 [shape = 'u32[144,128]{1,0:T(1,128)}', space=vmem, size = 0x12000, scoped, tag = 'internal scratch']
  #allocation2 [shape = 'bf16[2,8,32]{2,1,0:T(8,128)(2,1)}', space=vmem, size = 0x1000, scoped, tag = 'scratch operand']
  #allocation3 [shape = 'bf16[8,32]{1,0:T(8,128)(2,1)}', space=vmem, size = 0x800, scoped, tag = 'scratch operand']
  %s0 = inlined_call_operand.hbm [shape: bf16[2,8,32], index: 0, kind: input, shape index: {}]
  %s1 = inlined_call_operand.hbm [shape: bf16[3,32,32], index: 1, kind: input, shape index: {}]
  %s2 = inlined_call_operand.vmem [shape: f32[3,1,32], index: 2, kind: input, shape index: {}]
  %s3 = inlined_call_operand.hbm [shape: bf16[32,32], index: 3, kind: input, shape index: {}]
  %s4 = inlined_call_operand.vmem [shape: f32[1,32], index: 4, kind: input, shape index: {}]
  %s5 = inlined_call_operand.hbm [shape: f32[2,8,32], index: 5, kind: output, shape index: {}]
  %s6 = sld [smem:[#allocation0]]
  $region69: #{tpu_custom_call.1} parent=0
    _
  %s8 = ssub.s32 1, %s6
  %s9 = scalar_select 0, %s8, %s6
  $region1: #{tpu_custom_call.1} parent=0
    #allocation4 [shape = 'u8[4096]{0}', space=vmem, size = 0x1000, scoped, tag = 'input window, operand 0']
    #allocation5 [shape = 's32[2]{0}', space=sflag, size = 0x8, scoped, tag = 'scoped memory for tpu_custom_call.1']
    #allocation6 [shape = 's32[2]{0}', space=sflag, size = 0x8, scoped, tag = 'scoped memory for tpu_custom_call.1']
    #allocation7 [shape = 'u8[24576]{0}', space=vmem, size = 0x6000, scoped, tag = 'input window, operand 1, single buffered']
    #allocation8 [shape = 's32[1]{0}', space=sflag, size = 0x4, scoped, tag = 'scoped memory for tpu_custom_call.1']
    #allocation9 [shape = 'u8[8192]{0}', space=vmem, size = 0x2000, scoped, tag = 'input window, operand 3, single buffered']
    #allocation10 [shape = 'u8[8192]{0}', space=vmem, size = 0x2000, scoped, tag = 'output window, operand 0']
    %10 = vsyncpa [#allocation5], 0
    %s11 = scalar_lea.sflag [#allocation5], 1
    %12 = vsyncpa %s11, 0
    %13 = vsyncpa [#allocation8], 0
    %14 = vsyncpa [#allocation6], 0
    %s15 = scalar_lea.sflag [#allocation6], 1
    %16 = vsyncpa %s15, 0
    loop: start=0, step=1, limit=4
    $region2: #{tpu_custom_call.1} parent=1 // loop_pre_header
      _
    $region3: #{tpu_custom_call.1} parent=1 // loop_header
      %s18 = sphi 0, %s22
      %p19 = scmp.ge.s32.totalorder %s18, 4
      %s25 = sphi 0, %s37
      %s26 = sphi 0, %s33
      %s27 = sphi 0, %s25
      %s28 = sphi 0, %s26
      %s29 = sphi 0, %s27
      %s30 = sphi 0, %s28
      %s40 = sphi 0, %s42
      %s43 = sphi 0, %s40
      %s44 = sphi 0, %s43
      %s60 = sphi 0, %s44
      %s64 = sphi 0, %s64
      %s66 = sphi 0, %s64
      %s67 = sphi 0, %s66
      %s81 = sphi 0, %s67
      %s85 = sphi 0, %s85
      %s87 = sphi 0, %s85
      %s88 = sphi 0, %s87
      %s102 = sphi 0, %s88
      %s106 = sphi 0, %s106
      %s108 = sphi 0, %s106
      %s109 = sphi 0, %s108
      %s123 = sphi 0, %s109
      %s127 = sphi 0, %s127
      %s129 = sphi 0, %s127
      %s130 = sphi 0, %s129
      %s144 = sphi 0, %s130
      %s152 = sphi 0, %s154
      %s155 = sphi 0, %s152
      %s156 = sphi 0, %s155
      %s172 = sphi 0, %s156
    $region4: #{tpu_custom_call.1} parent=1 // loop_header_branch
      %21 = sbr.rel (%p19) target = $region8
    $region5: #{tpu_custom_call.1} parent=1 // loop_body
      %s23 = ssub.s32 %s18, 1
      %s24 = ssub.s32 %s18, 2
      %s31 = sadd.s32 1, %s26
      %p32 = scmp.ge.s32.totalorder %s31, 1
      %s33 = scalar_select %p32, 0, %s31
      %s34 = sadd.s32 1, %s25
      %s35 = scalar_select %p32, %s34, %s25
      %p36 = scmp.ge.s32.totalorder %s35, 2
      %s37 = scalar_select %p36, 0, %s35
      %s38 = ssub.s32 %s25, %s37
      %p39 = scmp.eq.s32.totalorder %s38, 0
      %s41 = sadd.s32 %s40, 1
      %s42 = scalar_select %p39, %s40, %s41
      %p45 = pneg %p39
      %p46 = scmp.eq.s32.totalorder %s18, 1
      %p47 = por %p45, %p46
      %p48 = scmp.ne.s32.totalorder %s40, %s43
      %p49 = scmp.eq.s32.totalorder %s18, 0
      %p50 = por %p48, %p49
      %p51 = scmp.ne.s32.totalorder %s40, %s43
      %p52 = scmp.eq.s32.totalorder %s23, 1
      %p53 = por %p51, %p52
      %p54 = scmp.ne.s32.totalorder %s43, %s44
      %p55 = scmp.eq.s32.totalorder %s23, 0
      %p56 = por %p54, %p55
      %p57 = scmp.ne.s32.totalorder %s43, %s44
      %p58 = scmp.eq.s32.totalorder %s24, 1
      %p59 = por %p57, %p58
      %p61 = scmp.ne.s32.totalorder %s44, %s60
      %p62 = scmp.eq.s32.totalorder %s24, 0
      %p63 = por %p61, %p62
      %s65 = sadd.s32 %s64, 1
      %p68 = scmp.eq.s32.totalorder %s18, 1
      %p69 = scmp.ne.s32.totalorder %s64, %s66
      %p70 = scmp.eq.s32.totalorder %s18, 0
      %p71 = por %p69, %p70
      %p72 = scmp.ne.s32.totalorder %s64, %s66
      %p73 = scmp.eq.s32.totalorder %s23, 1
      %p74 = por %p72, %p73
      %p75 = scmp.ne.s32.totalorder %s66, %s67
      %p76 = scmp.eq.s32.totalorder %s23, 0
      %p77 = por %p75, %p76
      %p78 = scmp.ne.s32.totalorder %s66, %s67
      %p79 = scmp.eq.s32.totalorder %s24, 1
      %p80 = por %p78, %p79
      %p82 = scmp.ne.s32.totalorder %s67, %s81
      %p83 = scmp.eq.s32.totalorder %s24, 0
      %p84 = por %p82, %p83
      %s86 = sadd.s32 %s85, 1
      %p89 = scmp.eq.s32.totalorder %s18, 1
      %p90 = scmp.ne.s32.totalorder %s85, %s87
      %p91 = scmp.eq.s32.totalorder %s18, 0
      %p92 = por %p90, %p91
      %p93 = scmp.ne.s32.totalorder %s85, %s87
      %p94 = scmp.eq.s32.totalorder %s23, 1
      %p95 = por %p93, %p94
      %p96 = scmp.ne.s32.totalorder %s87, %s88
      %p97 = scmp.eq.s32.totalorder %s23, 0
      %p98 = por %p96, %p97
      %p99 = scmp.ne.s32.totalorder %s87, %s88
      %p100 = scmp.eq.s32.totalorder %s24, 1
      %p101 = por %p99, %p100
      %p103 = scmp.ne.s32.totalorder %s88, %s102
      %p104 = scmp.eq.s32.totalorder %s24, 0
      %p105 = por %p103, %p104
      %s107 = sadd.s32 %s106, 1
      %p110 = scmp.eq.s32.totalorder %s18, 1
      %p111 = scmp.ne.s32.totalorder %s106, %s108
      %p112 = scmp.eq.s32.totalorder %s18, 0
      %p113 = por %p111, %p112
      %p114 = scmp.ne.s32.totalorder %s106, %s108
      %p115 = scmp.eq.s32.totalorder %s23, 1
      %p116 = por %p114, %p115
      %p117 = scmp.ne.s32.totalorder %s108, %s109
      %p118 = scmp.eq.s32.totalorder %s23, 0
      %p119 = por %p117, %p118
      %p120 = scmp.ne.s32.totalorder %s108, %s109
      %p121 = scmp.eq.s32.totalorder %s24, 1
      %p122 = por %p120, %p121
      %p124 = scmp.ne.s32.totalorder %s109, %s123
      %p125 = scmp.eq.s32.totalorder %s24, 0
      %p126 = por %p124, %p125
      %s128 = sadd.s32 %s127, 1
      %p131 = scmp.eq.s32.totalorder %s18, 1
      %p132 = scmp.ne.s32.totalorder %s127, %s129
      %p133 = scmp.eq.s32.totalorder %s18, 0
      %p134 = por %p132, %p133
      %p135 = scmp.ne.s32.totalorder %s127, %s129
      %p136 = scmp.eq.s32.totalorder %s23, 1
      %p137 = por %p135, %p136
      %p138 = scmp.ne.s32.totalorder %s129, %s130
      %p139 = scmp.eq.s32.totalorder %s23, 0
      %p140 = por %p138, %p139
      %p141 = scmp.ne.s32.totalorder %s129, %s130
      %p142 = scmp.eq.s32.totalorder %s24, 1
      %p143 = por %p141, %p142
      %p145 = scmp.ne.s32.totalorder %s130, %s144
      %p146 = scmp.eq.s32.totalorder %s24, 0
      %p147 = por %p145, %p146
      %s148 = ssub.s32 %s25, %s37
      %s149 = ssub.s32 %s26, %s33
      %s150 = sor.u32 %s148, %s149
      %p151 = scmp.eq.s32.totalorder %s150, 0
      %s153 = sadd.s32 %s152, 1
      %s154 = scalar_select %p151, %s152, %s153
      %p157 = pneg %p151
      %p158 = scmp.eq.s32.totalorder %s18, 1
      %p159 = por %p157, %p158
      %p160 = scmp.ne.s32.totalorder %s152, %s155
      %p161 = scmp.eq.s32.totalorder %s18, 0
      %p162 = por %p160, %p161
      %p163 = scmp.ne.s32.totalorder %s152, %s155
      %p164 = scmp.eq.s32.totalorder %s23, 1
      %p165 = por %p163, %p164
      %p166 = scmp.ne.s32.totalorder %s155, %s156
      %p167 = scmp.eq.s32.totalorder %s23, 0
      %p168 = por %p166, %p167
      %p169 = scmp.ne.s32.totalorder %s155, %s156
      %p170 = scmp.eq.s32.totalorder %s24, 1
      %p171 = por %p169, %p170
      %p173 = scmp.ne.s32.totalorder %s156, %s172
      %p174 = scmp.eq.s32.totalorder %s24, 0
      %p175 = por %p173, %p174
      %p176 = scmp.le.s32.totalorder 1, %s18
      %p177 = scmp.lt.s32.totalorder %s18, 3
      %p178 = pnand %p176, %p177
      %p179 = pneg %p178
      // Predicated region
      $region9: #{tpu_custom_call.1} parent=5 // pred_check
        _
      $region10: #{tpu_custom_call.1} parent=5 // pred_check_branch
        %181 = sbr.rel (%p178) target = $region12
      $region11: #{tpu_custom_call.1} parent=5 // pred_region
        %s182 = ssub.s32 %s18, 1
        // Predicated region
        $region13: #{tpu_custom_call.1} parent=11 // pred_check
          %p183 = pneg %p77
        $region14: #{tpu_custom_call.1} parent=11 // pred_check_branch
          %185 = sbr.rel (%p183) target = $region16
        $region15: #{tpu_custom_call.1} parent=11 // pred_region
          %s187 = ssub.s32 768, 768
          %188 = vsyncadd [#allocation8], %s187
          %s189 = sshll.u32 [#allocation7], 4
          %s190 = int_to_ptr.vmem [resolvable:$true] %s189
          %195 = dma.hbm_to_vmem [thread:$0]  %s1, 768, %s190, [#allocation8], 64, 64, 4
        $region16: #{tpu_custom_call.1} parent=11 // pred_fallthru
          _
        // Predicated region
        $region17: #{tpu_custom_call.1} parent=11 // pred_check
          %p196 = pneg %p98
        $region18: #{tpu_custom_call.1} parent=11 // pred_check_branch
          %198 = sbr.rel (%p196) target = $region20
        $region19: #{tpu_custom_call.1} parent=11 // pred_region
          _
        $region20: #{tpu_custom_call.1} parent=11 // pred_fallthru
          _
        // Predicated region
        $region21: #{tpu_custom_call.1} parent=11 // pred_check
          %p199 = pneg %p119
        $region22: #{tpu_custom_call.1} parent=11 // pred_check_branch
          %201 = sbr.rel (%p199) target = $region24
        $region23: #{tpu_custom_call.1} parent=11 // pred_region
          %s203 = ssub.s32 256, 256
          %204 = vsyncadd [#allocation8], %s203
          %s205 = sshll.u32 [#allocation9], 4
          %s206 = int_to_ptr.vmem [resolvable:$true] %s205
          %211 = dma.hbm_to_vmem [thread:$0]  %s3, 256, %s206, [#allocation8], 64, 64, 4
        $region24: #{tpu_custom_call.1} parent=11 // pred_fallthru
          _
        // Predicated region
        $region25: #{tpu_custom_call.1} parent=11 // pred_check
          %p212 = pneg %p140
        $region26: #{tpu_custom_call.1} parent=11 // pred_check_branch
          %214 = sbr.rel (%p212) target = $region28
        $region27: #{tpu_custom_call.1} parent=11 // pred_region
          _
        $region28: #{tpu_custom_call.1} parent=11 // pred_fallthru
          _
      $region12: #{tpu_custom_call.1} parent=5 // pred_fallthru
        _
      %p215 = scmp.lt.s32.totalorder %s18, 2
      // Predicated region
      $region29: #{tpu_custom_call.1} parent=5 // pred_check
        %p216 = pneg %p215
      $region30: #{tpu_custom_call.1} parent=5 // pred_check_branch
        %218 = sbr.rel (%p216) target = $region32
      $region31: #{tpu_custom_call.1} parent=5 // pred_region
        // Predicated region
        $region33: #{tpu_custom_call.1} parent=31 // pred_check
          %p219 = pneg %p50
        $region34: #{tpu_custom_call.1} parent=31 // pred_check_branch
          %221 = sbr.rel (%p219) target = $region36
        $region35: #{tpu_custom_call.1} parent=31 // pred_region
          %s222 = sand.u32 %s40, 1
          %s223 = scalar_lea.sflag [#allocation5], %s222
          %s224 = sand.u32 %s40, 1
          %s225 = smul.addr %s224, 4
          %s226 = scalar_lea.vmem [#allocation4], %s225
          %s228 = ssub.s32 64, 64
          %229 = vsyncadd %s223, %s228
          %s230 = smul.addr %s25, 64
          %s231 = scalar_lea.hbm %s0, %s230
          %s233 = sshll.u32 %s226, 4
          %s234 = int_to_ptr.vmem [resolvable:$true] %s233
          %236 = dma.hbm_to_vmem [thread:$0]  %s231, 64, %s234, %s223
        $region36: #{tpu_custom_call.1} parent=31 // pred_fallthru
          _
      $region32: #{tpu_custom_call.1} parent=5 // pred_fallthru
        _
      %p237 = scmp.le.s32.totalorder 1, %s18
      %p238 = scmp.lt.s32.totalorder %s18, 3
      %p239 = pnand %p237, %p238
      %p240 = pneg %p239
      // Predicated region
      $region37: #{tpu_custom_call.1} parent=5 // pred_check
        _
      $region38: #{tpu_custom_call.1} parent=5 // pred_check_branch
        %242 = sbr.rel (%p239) target = $region40
      $region39: #{tpu_custom_call.1} parent=5 // pred_region
        %s243 = ssub.s32 %s18, 1
        %s244 = sand.u32 %s43, 1
        %s245 = scalar_lea.sflag [#allocation5], %s244
        %s246 = sand.u32 %s43, 1
        %s247 = smul.addr %s246, 4
        %s248 = scalar_lea.vmem [#allocation4], %s247
        // Predicated region
        $region41: #{tpu_custom_call.1} parent=39 // pred_check
          %p249 = pneg %p56
        $region42: #{tpu_custom_call.1} parent=39 // pred_check_branch
          %251 = sbr.rel (%p249) target = $region44
        $region43: #{tpu_custom_call.1} parent=39 // pred_region
          %252 = dma.done %s245, 64
        $region44: #{tpu_custom_call.1} parent=39 // pred_fallthru
          _
        // Predicated region
        $region45: #{tpu_custom_call.1} parent=39 // pred_check
          %p253 = pneg %p77
        $region46: #{tpu_custom_call.1} parent=39 // pred_check_branch
          %255 = sbr.rel (%p253) target = $region48
        $region47: #{tpu_custom_call.1} parent=39 // pred_region
          %256 = dma.done [#allocation8], 768
        $region48: #{tpu_custom_call.1} parent=39 // pred_fallthru
          _
        // Predicated region
        $region49: #{tpu_custom_call.1} parent=39 // pred_check
          %p257 = pneg %p119
        $region50: #{tpu_custom_call.1} parent=39 // pred_check_branch
          %259 = sbr.rel (%p257) target = $region52
        $region51: #{tpu_custom_call.1} parent=39 // pred_region
          %260 = dma.done [#allocation8], 256
        $region52: #{tpu_custom_call.1} parent=39 // pred_fallthru
          _
        %s261 = sand.u32 %s43, 1
        %s262 = scalar_lea.sflag [#allocation5], %s261
        %s263 = sand.u32 %s43, 1
        %s264 = smul.addr %s263, 4
        %s265 = scalar_lea.vmem [#allocation4], %s264
        %p266 = pneg %p56
        %p267 = pneg %p53
        %p268 = pneg %p77
        %p269 = pneg %p74
        %p270 = pneg %p98
        %p271 = pneg %p95
        %p272 = pneg %p119
        %p273 = pneg %p116
        %p274 = pneg %p140
        %p275 = pneg %p137
        %p276 = pneg %p168
        %p277 = pneg %p165
        %s278 = sand.u32 %s155, 1
        %s279 = scalar_lea.sflag [#allocation6], %s278
        %s280 = sand.u32 %s155, 1
        %s281 = smul.addr %s280, 8
        %s282 = scalar_lea.vmem [#allocation10], %s281
        %p284 = scmp.eq.s32.totalorder %s28, 0
        // Predicated region
        $region53: #{tpu_custom_call.1} parent=39 // pred_check
          %p285 = pneg %p284
        $region54: #{tpu_custom_call.1} parent=39 // pred_check_branch
          %287 = sbr.rel (%p285) target = $region56
        $region55: #{tpu_custom_call.1} parent=39 // pred_region
          %s288 = scalar_lea.vmem [#allocation7], 16
          %v289 = vld [vmem:[%s288] sm:$0xf]
          %v290 = vld [vmem:[%s288 + $0x4] sm:$0xf]
          %v291 = vld [vmem:[%s288 + $0x8] sm:$0xf]
          %v292 = vld [vmem:[%s288 + $0xc] sm:$0xf]
          %s293 = scalar_lea.vmem [#allocation7], 32
          %v294 = vld [vmem:[%s293] sm:$0xf]
          %v295 = vld [vmem:[%s293 + $0x4] sm:$0xf]
          %v296 = vld [vmem:[%s293 + $0x8] sm:$0xf]
          %v297 = vld [vmem:[%s293 + $0xc] sm:$0xf]
          %s298 = scalar_lea.vmem %s2, 1
          %v299 = vld [vmem:[%s298] sm:$0x1]
          %s300 = scalar_lea.vmem %s2, 2
          %v301 = vld [vmem:[%s300] sm:$0x1]
          %v302 = vld [vmem:[%s248] sm:$0xf]
          %v304 = vlaneseq
          %v305 = vshrl.u32 %v304, 7
          %v306 = vsub.s32 0, %v305
          %v307 = vrot.slane %v299, %v306
          %v313 = vunpack.c.l.b16 %v289
          %v314 = vunpack.c.l.b16 %v290
          %v315 = vunpack.c.l.b16 %v291
          %v316 = vunpack.c.l.b16 %v292
          %v317 = vpack.c.b16 %v314, %v313
          %v318 = vpack.c.b16 %v316, %v315
          %vm321 = vcmask 261120
          %v323 = vsel %vm321, %v302, 0
          %325 = vmatprep.subr.bf16.mxu0 0
          %326 = vmatpush1.bf16.msra.mxu0 %v317
          %327 = vmatprep.subr.bf16.mxu0 0
          %328 = vmatpush1.bf16.msra.mxu0 %v318
          %329 = vmatprep.subr.bf16.mxu0 0
          %330 = vmatpush1.bf16.msra.mxu0 0
          %331 = vmatprep.subr.bf16.mxu0 0
          %332 = vmatpush1.bf16.msra.mxu0 0
          %333 = vmatprep.subr.bf16.mxu0 0
          %334 = vmatpush1.bf16.msra.mxu0 0
          %335 = vmatprep.subr.bf16.mxu0 0
          %336 = vmatpush1.bf16.msra.mxu0 0
          %337 = vmatprep.subr.bf16.mxu0 0
          %338 = vmatpush1.bf16.msra.mxu0 0
          %339 = vmatprep.subr.bf16.mxu0 0
          %340 = vmatpush1.bf16.msra.mxu0 0
          %341 = vmatprep.subr.bf16.mxu0 0
          %342 = vmatpush1.bf16.msra.mxu0 0
          %343 = vmatprep.subr.bf16.mxu0 0
          %344 = vmatpush1.bf16.msra.mxu0 0
          %345 = vmatprep.subr.bf16.mxu0 0
          %346 = vmatpush1.bf16.msra.mxu0 0
          %347 = vmatprep.subr.bf16.mxu0 0
          %348 = vmatpush1.bf16.msra.mxu0 0
          %349 = vmatprep.subr.bf16.mxu0 0
          %350 = vmatpush1.bf16.msra.mxu0 0
          %351 = vmatprep.subr.bf16.mxu0 0
          %352 = vmatpush1.bf16.msra.mxu0 0
          %353 = vmatprep.subr.bf16.mxu0 0
          %354 = vmatpush1.bf16.msra.mxu0 0
          %355 = vmatprep.subr.bf16.mxu0 0
          %356 = vmatpush1.bf16.msra.mxu0 0
          %357 = vmatprep.mubr.bf16.mxu0 0
          %358 = vmatmul.mubr.bf16.gmra.mrb[0].mxu0 %v323
          %v359 = vpop.f32.mrb[0].mxu0
          %v360 = vadd.f32 %v307, %v359
          %v361 = vpop.f32.mrb[0].mxu0
          %v362 = vpop.f32.mrb[0].mxu0
          %v363 = vpop.f32.mrb[0].mxu0
          %364 = vdwg.mxu0
          %v365 = vpack.c.bf16 %v360, %v360
          %vm366 = vcmask 257024
          %367 = vst.msk [vmem:[#allocation2] sm:$0xf] %vm366, %v365
          %v369 = vlaneseq
          %v370 = vshrl.u32 %v369, 7
          %v371 = vsub.s32 0, %v370
          %v372 = vrot.slane %v301, %v371
          %v378 = vunpack.c.l.b16 %v294
          %v379 = vunpack.c.l.b16 %v295
          %v380 = vunpack.c.l.b16 %v296
          %v381 = vunpack.c.l.b16 %v297
          %v382 = vpack.c.b16 %v379, %v378
          %v383 = vpack.c.b16 %v381, %v380
          %386 = vmatprep.subr.bf16.mxu0 0
          %387 = vmatpush1.bf16.msra.mxu0 %v382
          %388 = vmatprep.subr.bf16.mxu0 0
          %389 = vmatpush1.bf16.msra.mxu0 %v383
          %390 = vmatprep.subr.bf16.mxu0 0
          %391 = vmatpush1.bf16.msra.mxu0 0
          %392 = vmatprep.subr.bf16.mxu0 0
          %393 = vmatpush1.bf16.msra.mxu0 0
          %394 = vmatprep.subr.bf16.mxu0 0
          %395 = vmatpush1.bf16.msra.mxu0 0
          %396 = vmatprep.subr.bf16.mxu0 0
          %397 = vmatpush1.bf16.msra.mxu0 0
          %398 = vmatprep.subr.bf16.mxu0 0
          %399 = vmatpush1.bf16.msra.mxu0 0
          %400 = vmatprep.subr.bf16.mxu0 0
          %401 = vmatpush1.bf16.msra.mxu0 0
          %402 = vmatprep.subr.bf16.mxu0 0
          %403 = vmatpush1.bf16.msra.mxu0 0
          %404 = vmatprep.subr.bf16.mxu0 0
          %405 = vmatpush1.bf16.msra.mxu0 0
          %406 = vmatprep.subr.bf16.mxu0 0
          %407 = vmatpush1.bf16.msra.mxu0 0
          %408 = vmatprep.subr.bf16.mxu0 0
          %409 = vmatpush1.bf16.msra.mxu0 0
          %410 = vmatprep.subr.bf16.mxu0 0
          %411 = vmatpush1.bf16.msra.mxu0 0
          %412 = vmatprep.subr.bf16.mxu0 0
          %413 = vmatpush1.bf16.msra.mxu0 0
          %414 = vmatprep.subr.bf16.mxu0 0
          %415 = vmatpush1.bf16.msra.mxu0 0
          %416 = vmatprep.subr.bf16.mxu0 0
          %417 = vmatpush1.bf16.msra.mxu0 0
          %418 = vmatprep.mubr.bf16.mxu0 0
          %419 = vmatmul.mubr.bf16.gmra.mrb[0].mxu0 %v323
          %v420 = vpop.f32.mrb[0].mxu0
          %v421 = vadd.f32 %v372, %v420
          %v422 = vpop.f32.mrb[0].mxu0
          %v423 = vpop.f32.mrb[0].mxu0
          %v424 = vpop.f32.mrb[0].mxu0
          %425 = vdwg.mxu0
          %v426 = vpack.c.bf16 %v421, %v421
          %s427 = scalar_lea.vmem [#allocation2], 4
          %428 = vst.msk [vmem:[%s427] sm:$0xf] %vm366, %v426
        $region56: #{tpu_custom_call.1} parent=39 // pred_fallthru
          _
        %s429 = smul.u32 %s28, 8
        %s430 = sshra.s32 %s429, 3
        %s431 = sand.u32 %s429, 7
        %s432 = smul.addr %s430, 4
        %s433 = scalar_lea.vmem %s248, %s432 [#allocation4]
        %v434 = vld [vmem:[%s433] sm:$0xf]
        %v435 = vld [vmem:[#allocation7] sm:$0xf]
        %v436 = vld [vmem:[#allocation7 + $0x4] sm:$0xf]
        %v437 = vld [vmem:[#allocation7 + $0x8] sm:$0xf]
        %v438 = vld [vmem:[#allocation7 + $0xc] sm:$0xf]
        %v439 = vld [vmem:[%s2] sm:$0x1]
        %v441 = vlaneseq
        %v442 = vshrl.u32 %v441, 7
        %v443 = vsub.s32 0, %v442
        %v444 = vrot.slane %v439, %v443
        %v450 = vunpack.c.l.b16 %v435
        %v451 = vunpack.c.l.b16 %v436
        %v452 = vunpack.c.l.b16 %v437
        %v453 = vunpack.c.l.b16 %v438
        %v454 = vpack.c.b16 %v451, %v450
        %v455 = vpack.c.b16 %v453, %v452
        %vm458 = vcmask 261120
        %v460 = vsel %vm458, %v434, 0
        %462 = vmatprep.subr.bf16.mxu0 0
        %463 = vmatpush1.bf16.msra.mxu0 %v454
        %464 = vmatprep.subr.bf16.mxu0 0
        %465 = vmatpush1.bf16.msra.mxu0 %v455
        %466 = vmatprep.subr.bf16.mxu0 0
        %467 = vmatpush1.bf16.msra.mxu0 0
        %468 = vmatprep.subr.bf16.mxu0 0
        %469 = vmatpush1.bf16.msra.mxu0 0
        %470 = vmatprep.subr.bf16.mxu0 0
        %471 = vmatpush1.bf16.msra.mxu0 0
        %472 = vmatprep.subr.bf16.mxu0 0
        %473 = vmatpush1.bf16.msra.mxu0 0
        %474 = vmatprep.subr.bf16.mxu0 0
        %475 = vmatpush1.bf16.msra.mxu0 0
        %476 = vmatprep.subr.bf16.mxu0 0
        %477 = vmatpush1.bf16.msra.mxu0 0
        %478 = vmatprep.subr.bf16.mxu0 0
        %479 = vmatpush1.bf16.msra.mxu0 0
        %480 = vmatprep.subr.bf16.mxu0 0
        %481 = vmatpush1.bf16.msra.mxu0 0
        %482 = vmatprep.subr.bf16.mxu0 0
        %483 = vmatpush1.bf16.msra.mxu0 0
        %484 = vmatprep.subr.bf16.mxu0 0
        %485 = vmatpush1.bf16.msra.mxu0 0
        %486 = vmatprep.subr.bf16.mxu0 0
        %487 = vmatpush1.bf16.msra.mxu0 0
        %488 = vmatprep.subr.bf16.mxu0 0
        %489 = vmatpush1.bf16.msra.mxu0 0
        %490 = vmatprep.subr.bf16.mxu0 0
        %491 = vmatpush1.bf16.msra.mxu0 0
        %492 = vmatprep.subr.bf16.mxu0 0
        %493 = vmatpush1.bf16.msra.mxu0 0
        %494 = vmatprep.mubr.bf16.mxu0 0
        %495 = vmatmul.mubr.bf16.gmra.mrb[0].mxu0 %v460
        %v496 = vpop.f32.mrb[0].mxu0
        %v497 = vadd.f32 %v444, %v496
        %v498 = vpop.f32.mrb[0].mxu0
        %v499 = vpop.f32.mrb[0].mxu0
        %v500 = vpop.f32.mrb[0].mxu0
        %501 = vdwg.mxu0
        %v502 = vmul.f32 %v497, 0.35355338
        %v503 = vpack.c.bf16 %v502, %v502
        %v504 = vld [vmem:[#allocation2] sm:$0xf]
        %s505 = scalar_lea.vmem [#allocation2], 4
        %v506 = vld [vmem:[%s505] sm:$0xf]
        %vm507 = vcmask 64512
        %v509 = vsel %vm507, %v503, 0
        %v512 = vsel %vm507, %v504, 0
        %514 = vmatprep.subr.bf16.mxu0 0
        %515 = vmatpush1.bf16.xpose.msra.mxu0 %v512
        %516 = vmatprep.subr.bf16.mxu0 0
        %517 = vmatpush1.bf16.xpose.msra.mxu0 0
        %518 = vmatprep.subr.bf16.mxu0 0
        %519 = vmatpush1.bf16.xpose.msra.mxu0 0
        %520 = vmatprep.subr.bf16.mxu0 0
        %521 = vmatpush1.bf16.xpose.msra.mxu0 0
        %522 = vmatprep.subr.bf16.mxu0 0
        %523 = vmatpush1.bf16.xpose.msra.mxu0 0
        %524 = vmatprep.subr.bf16.mxu0 0
        %525 = vmatpush1.bf16.xpose.msra.mxu0 0
        %526 = vmatprep.subr.bf16.mxu0 0
        %527 = vmatpush1.bf16.xpose.msra.mxu0 0
        %528 = vmatprep.subr.bf16.mxu0 0
        %529 = vmatpush1.bf16.xpose.msra.mxu0 0
        %530 = vmatprep.subr.bf16.mxu0 0
        %531 = vmatpush1.bf16.xpose.msra.mxu0 0
        %532 = vmatprep.subr.bf16.mxu0 0
        %533 = vmatpush1.bf16.xpose.msra.mxu0 0
        %534 = vmatprep.subr.bf16.mxu0 0
        %535 = vmatpush1.bf16.xpose.msra.mxu0 0
        %536 = vmatprep.subr.bf16.mxu0 0
        %537 = vmatpush1.bf16.xpose.msra.mxu0 0
        %538 = vmatprep.subr.bf16.mxu0 0
        %539 = vmatpush1.bf16.xpose.msra.mxu0 0
        %540 = vmatprep.subr.bf16.mxu0 0
        %541 = vmatpush1.bf16.xpose.msra.mxu0 0
        %542 = vmatprep.subr.bf16.mxu0 0
        %543 = vmatpush1.bf16.xpose.msra.mxu0 0
        %544 = vmatprep.subr.bf16.mxu0 0
        %545 = vmatpush1.bf16.xpose.msra.mxu0 0
        %546 = vmatprep.mubr.bf16.mxu0 0
        %547 = vmatmul.mubr.bf16.gmra.mrb[0].mxu0 %v509
        %v548 = vpop.f32.mrb[0].mxu0
        %v549 = vadd.f32 0.0, %v548
        %v550 = vpop.f32.mrb[0].mxu0
        %v551 = vpop.f32.mrb[0].mxu0
        %v552 = vpop.f32.mrb[0].mxu0
        %553 = vdwg.mxu0
        %v554 = vsel %vm507, %v549, -inf
        %555 = vmax.xlane.f32.xlu0 %v554
        %v556 = vpop.xlane.xlu0 %555
        %v557 = vsub.f32 -inf, %v556
        %v558 = vmul.f32 %v557, 1.442695
        %v559 = vpow.pop %v558
        %v560 = vsub.f32 %v549, %v556
        %v561 = vpack.c.bf16 %v560, %v560
        %v563 = vmul.bf16 %v561, 1069105081
        %v564 = vpow.bf16.pop %v563
        %v565 = vmul.f32 %v559, 0.0
        %v566 = vunpack.c.l.bf16 %v564
        %v567 = vsel %vm507, %v566, 0.0
        %568 = vadd.xlane.f32.xlu0 %v567
        %v569 = vpop.xlane.xlu0 %568
        %v570 = vadd.f32 %v565, %v569
        %v572 = vsel %vm507, %v564, 0
        %vm574 = vcmask 1043456
        %v576 = vsel %vm574, %v506, 0
        %578 = vmatprep.subr.bf16.mxu0 0
        %579 = vmatpush1.bf16.msra.mxu0 %v576
        %580 = vmatprep.subr.bf16.mxu0 0
        %581 = vmatpush1.bf16.msra.mxu0 0
        %582 = vmatprep.subr.bf16.mxu0 0
        %583 = vmatpush1.bf16.msra.mxu0 0
        %584 = vmatprep.subr.bf16.mxu0 0
        %585 = vmatpush1.bf16.msra.mxu0 0
        %586 = vmatprep.subr.bf16.mxu0 0
        %587 = vmatpush1.bf16.msra.mxu0 0
        %588 = vmatprep.subr.bf16.mxu0 0
        %589 = vmatpush1.bf16.msra.mxu0 0
        %590 = vmatprep.subr.bf16.mxu0 0
        %591 = vmatpush1.bf16.msra.mxu0 0
        %592 = vmatprep.subr.bf16.mxu0 0
        %593 = vmatpush1.bf16.msra.mxu0 0
        %594 = vmatprep.subr.bf16.mxu0 0
        %595 = vmatpush1.bf16.msra.mxu0 0
        %596 = vmatprep.subr.bf16.mxu0 0
        %597 = vmatpush1.bf16.msra.mxu0 0
        %598 = vmatprep.subr.bf16.mxu0 0
        %599 = vmatpush1.bf16.msra.mxu0 0
        %600 = vmatprep.subr.bf16.mxu0 0
        %601 = vmatpush1.bf16.msra.mxu0 0
        %602 = vmatprep.subr.bf16.mxu0 0
        %603 = vmatpush1.bf16.msra.mxu0 0
        %604 = vmatprep.subr.bf16.mxu0 0
        %605 = vmatpush1.bf16.msra.mxu0 0
        %606 = vmatprep.subr.bf16.mxu0 0
        %607 = vmatpush1.bf16.msra.mxu0 0
        %608 = vmatprep.subr.bf16.mxu0 0
        %609 = vmatpush1.bf16.msra.mxu0 0
        %610 = vmatprep.mubr.bf16.mxu0 0
        %611 = vmatmul.mubr.bf16.gmra.mrb[0].mxu0 %v572
        %v612 = vpop.f32.mrb[0].mxu0
        %v613 = vadd.f32 0.0, %v612
        %v614 = vpop.f32.mrb[0].mxu0
        %v615 = vpop.f32.mrb[0].mxu0
        %v616 = vpop.f32.mrb[0].mxu0
        %617 = vdwg.mxu0
        %v618 = vadd.f32 %v565, %v613
        %620 = vrot.lane.b32.xlu0 %v503, 120
        %v621 = vpop.permute.xlu0 %620
        %v623 = vunpack.c.l.b16 %v504
        %v624 = vpack.c.b16 %v623, %v623
        %625 = vrot.lane.b32.xlu0 %v624, 120
        %v626 = vpop.permute.xlu0 %625
        %v628 = vsel %vm507, %v621, 0
        %v631 = vsel %vm507, %v626, 0
        %633 = vmatprep.subr.bf16.mxu0 0
        %634 = vmatpush1.bf16.xpose.msra.mxu0 %v631
        %635 = vmatprep.subr.bf16.mxu0 0
        %636 = vmatpush1.bf16.xpose.msra.mxu0 0
        %637 = vmatprep.subr.bf16.mxu0 0
        %638 = vmatpush1.bf16.xpose.msra.mxu0 0
        %639 = vmatprep.subr.bf16.mxu0 0
        %640 = vmatpush1.bf16.xpose.msra.mxu0 0
        %641 = vmatprep.subr.bf16.mxu0 0
        %642 = vmatpush1.bf16.xpose.msra.mxu0 0
        %643 = vmatprep.subr.bf16.mxu0 0
        %644 = vmatpush1.bf16.xpose.msra.mxu0 0
        %645 = vmatprep.subr.bf16.mxu0 0
        %646 = vmatpush1.bf16.xpose.msra.mxu0 0
        %647 = vmatprep.subr.bf16.mxu0 0
        %648 = vmatpush1.bf16.xpose.msra.mxu0 0
        %649 = vmatprep.subr.bf16.mxu0 0
        %650 = vmatpush1.bf16.xpose.msra.mxu0 0
        %651 = vmatprep.subr.bf16.mxu0 0
        %652 = vmatpush1.bf16.xpose.msra.mxu0 0
        %653 = vmatprep.subr.bf16.mxu0 0
        %654 = vmatpush1.bf16.xpose.msra.mxu0 0
        %655 = vmatprep.subr.bf16.mxu0 0
        %656 = vmatpush1.bf16.xpose.msra.mxu0 0
        %657 = vmatprep.subr.bf16.mxu0 0
        %658 = vmatpush1.bf16.xpose.msra.mxu0 0
        %659 = vmatprep.subr.bf16.mxu0 0
        %660 = vmatpush1.bf16.xpose.msra.mxu0 0
        %661 = vmatprep.subr.bf16.mxu0 0
        %662 = vmatpush1.bf16.xpose.msra.mxu0 0
        %663 = vmatprep.subr.bf16.mxu0 0
        %664 = vmatpush1.bf16.xpose.msra.mxu0 0
        %665 = vmatprep.mubr.bf16.mxu0 0
        %666 = vmatmul.mubr.bf16.gmra.mrb[0].mxu0 %v628
        %v667 = vpop.f32.mrb[0].mxu0
        %v668 = vadd.f32 0.0, %v667
        %v669 = vpop.f32.mrb[0].mxu0
        %v670 = vpop.f32.mrb[0].mxu0
        %v671 = vpop.f32.mrb[0].mxu0
        %672 = vdwg.mxu0
        %v673 = vsel %vm507, %v668, -inf
        %674 = vmax.xlane.f32.xlu0 %v673
        %v675 = vpop.xlane.xlu0 %674
        %v676 = vsub.f32 -inf, %v675
        %v677 = vmul.f32 %v676, 1.442695
        %v678 = vpow.pop %v677
        %v679 = vsub.f32 %v668, %v675
        %v680 = vpack.c.bf16 %v679, %v679
        %v682 = vmul.bf16 %v680, 1069105081
        %v683 = vpow.bf16.pop %v682
        %v684 = vmul.f32 %v678, 0.0
        %v685 = vunpack.c.l.bf16 %v683
        %v686 = vsel %vm507, %v685, 0.0
        %687 = vadd.xlane.f32.xlu0 %v686
        %v688 = vpop.xlane.xlu0 %687
        %v689 = vadd.f32 %v684, %v688
        %v691 = vunpack.c.l.b16 %v506
        %v692 = vpack.c.b16 %v691, %v691
        %693 = vrot.lane.b32.xlu0 %v692, 120
        %v694 = vpop.permute.xlu0 %693
        %v696 = vsel %vm507, %v683, 0
        %v699 = vsel %vm574, %v694, 0
        %701 = vmatprep.subr.bf16.mxu0 0
        %702 = vmatpush1.bf16.msra.mxu0 %v699
        %703 = vmatprep.subr.bf16.mxu0 0
        %704 = vmatpush1.bf16.msra.mxu0 0
        %705 = vmatprep.subr.bf16.mxu0 0
        %706 = vmatpush1.bf16.msra.mxu0 0
        %707 = vmatprep.subr.bf16.mxu0 0
        %708 = vmatpush1.bf16.msra.mxu0 0
        %709 = vmatprep.subr.bf16.mxu0 0
        %710 = vmatpush1.bf16.msra.mxu0 0
        %711 = vmatprep.subr.bf16.mxu0 0
        %712 = vmatpush1.bf16.msra.mxu0 0
        %713 = vmatprep.subr.bf16.mxu0 0
        %714 = vmatpush1.bf16.msra.mxu0 0
        %715 = vmatprep.subr.bf16.mxu0 0
        %716 = vmatpush1.bf16.msra.mxu0 0
        %717 = vmatprep.subr.bf16.mxu0 0
        %718 = vmatpush1.bf16.msra.mxu0 0
        %719 = vmatprep.subr.bf16.mxu0 0
        %720 = vmatpush1.bf16.msra.mxu0 0
        %721 = vmatprep.subr.bf16.mxu0 0
        %722 = vmatpush1.bf16.msra.mxu0 0
        %723 = vmatprep.subr.bf16.mxu0 0
        %724 = vmatpush1.bf16.msra.mxu0 0
        %725 = vmatprep.subr.bf16.mxu0 0
        %726 = vmatpush1.bf16.msra.mxu0 0
        %727 = vmatprep.subr.bf16.mxu0 0
        %728 = vmatpush1.bf16.msra.mxu0 0
        %729 = vmatprep.subr.bf16.mxu0 0
        %730 = vmatpush1.bf16.msra.mxu0 0
        %731 = vmatprep.subr.bf16.mxu0 0
        %732 = vmatpush1.bf16.msra.mxu0 0
        %733 = vmatprep.mubr.bf16.mxu0 0
        %734 = vmatmul.mubr.bf16.gmra.mrb[0].mxu0 %v696
        %v735 = vpop.f32.mrb[0].mxu0
        %v736 = vadd.f32 0.0, %v735
        %v737 = vpop.f32.mrb[0].mxu0
        %v738 = vpop.f32.mrb[0].mxu0
        %v739 = vpop.f32.mrb[0].mxu0
        %740 = vdwg.mxu0
        %v741 = vadd.f32 %v684, %v736
        %742 = vrot.lane.b32.xlu0 %v503, 112
        %v743 = vpop.permute.xlu0 %742
        %744 = vrot.lane.b32.xlu0 %v624, 112
        %v745 = vpop.permute.xlu0 %744
        %v747 = vsel %vm507, %v743, 0
        %v750 = vsel %vm507, %v745, 0
        %752 = vmatprep.subr.bf16.mxu0 0
        %753 = vmatpush1.bf16.xpose.msra.mxu0 %v750
        %754 = vmatprep.subr.bf16.mxu0 0
        %755 = vmatpush1.bf16.xpose.msra.mxu0 0
        %756 = vmatprep.subr.bf16.mxu0 0
        %757 = vmatpush1.bf16.xpose.msra.mxu0 0
        %758 = vmatprep.subr.bf16.mxu0 0
        %759 = vmatpush1.bf16.xpose.msra.mxu0 0
        %760 = vmatprep.subr.bf16.mxu0 0
        %761 = vmatpush1.bf16.xpose.msra.mxu0 0
        %762 = vmatprep.subr.bf16.mxu0 0
        %763 = vmatpush1.bf16.xpose.msra.mxu0 0
        %764 = vmatprep.subr.bf16.mxu0 0
        %765 = vmatpush1.bf16.xpose.msra.mxu0 0
        %766 = vmatprep.subr.bf16.mxu0 0
        %767 = vmatpush1.bf16.xpose.msra.mxu0 0
        %768 = vmatprep.subr.bf16.mxu0 0
        %769 = vmatpush1.bf16.xpose.msra.mxu0 0
        %770 = vmatprep.subr.bf16.mxu0 0
        %771 = vmatpush1.bf16.xpose.msra.mxu0 0
        %772 = vmatprep.subr.bf16.mxu0 0
        %773 = vmatpush1.bf16.xpose.msra.mxu0 0
        %774 = vmatprep.subr.bf16.mxu0 0
        %775 = vmatpush1.bf16.xpose.msra.mxu0 0
        %776 = vmatprep.subr.bf16.mxu0 0
        %777 = vmatpush1.bf16.xpose.msra.mxu0 0
        %778 = vmatprep.subr.bf16.mxu0 0
        %779 = vmatpush1.bf16.xpose.msra.mxu0 0
        %780 = vmatprep.subr.bf16.mxu0 0
        %781 = vmatpush1.bf16.xpose.msra.mxu0 0
        %782 = vmatprep.subr.bf16.mxu0 0
        %783 = vmatpush1.bf16.xpose.msra.mxu0 0
        %784 = vmatprep.mubr.bf16.mxu0 0
        %785 = vmatmul.mubr.bf16.gmra.mrb[0].mxu0 %v747
        %v786 = vpop.f32.mrb[0].mxu0
        %v787 = vadd.f32 0.0, %v786
        %v788 = vpop.f32.mrb[0].mxu0
        %v789 = vpop.f32.mrb[0].mxu0
        %v790 = vpop.f32.mrb[0].mxu0
        %791 = vdwg.mxu0
        %v792 = vsel %vm507, %v787, -inf
        %793 = vmax.xlane.f32.xlu0 %v792
        %v794 = vpop.xlane.xlu0 %793
        %v795 = vsub.f32 -inf, %v794
        %v796 = vmul.f32 %v795, 1.442695
        %v797 = vpow.pop %v796
        %v798 = vsub.f32 %v787, %v794
        %v799 = vpack.c.bf16 %v798, %v798
        %v801 = vmul.bf16 %v799, 1069105081
        %v802 = vpow.bf16.pop %v801
        %v803 = vmul.f32 %v797, 0.0
        %v804 = vunpack.c.l.bf16 %v802
        %v805 = vsel %vm507, %v804, 0.0
        %806 = vadd.xlane.f32.xlu0 %v805
        %v807 = vpop.xlane.xlu0 %806
        %v808 = vadd.f32 %v803, %v807
        %809 = vrot.lane.b32.xlu0 %v692, 112
        %v810 = vpop.permute.xlu0 %809
        %v812 = vsel %vm507, %v802, 0
        %v815 = vsel %vm574, %v810, 0
        %817 = vmatprep.subr.bf16.mxu0 0
        %818 = vmatpush1.bf16.msra.mxu0 %v815
        %819 = vmatprep.subr.bf16.mxu0 0
        %820 = vmatpush1.bf16.msra.mxu0 0
        %821 = vmatprep.subr.bf16.mxu0 0
        %822 = vmatpush1.bf16.msra.mxu0 0
        %823 = vmatprep.subr.bf16.mxu0 0
        %824 = vmatpush1.bf16.msra.mxu0 0
        %825 = vmatprep.subr.bf16.mxu0 0
        %826 = vmatpush1.bf16.msra.mxu0 0
        %827 = vmatprep.subr.bf16.mxu0 0
        %828 = vmatpush1.bf16.msra.mxu0 0
        %829 = vmatprep.subr.bf16.mxu0 0
        %830 = vmatpush1.bf16.msra.mxu0 0
        %831 = vmatprep.subr.bf16.mxu0 0
        %832 = vmatpush1.bf16.msra.mxu0 0
        %833 = vmatprep.subr.bf16.mxu0 0
        %834 = vmatpush1.bf16.msra.mxu0 0
        %835 = vmatprep.subr.bf16.mxu0 0
        %836 = vmatpush1.bf16.msra.mxu0 0
        %837 = vmatprep.subr.bf16.mxu0 0
        %838 = vmatpush1.bf16.msra.mxu0 0
        %839 = vmatprep.subr.bf16.mxu0 0
        %840 = vmatpush1.bf16.msra.mxu0 0
        %841 = vmatprep.subr.bf16.mxu0 0
        %842 = vmatpush1.bf16.msra.mxu0 0
        %843 = vmatprep.subr.bf16.mxu0 0
        %844 = vmatpush1.bf16.msra.mxu0 0
        %845 = vmatprep.subr.bf16.mxu0 0
        %846 = vmatpush1.bf16.msra.mxu0 0
        %847 = vmatprep.subr.bf16.mxu0 0
        %848 = vmatpush1.bf16.msra.mxu0 0
        %849 = vmatprep.mubr.bf16.mxu0 0
        %850 = vmatmul.mubr.bf16.gmra.mrb[0].mxu0 %v812
        %v851 = vpop.f32.mrb[0].mxu0
        %v852 = vadd.f32 0.0, %v851
        %v853 = vpop.f32.mrb[0].mxu0
        %v854 = vpop.f32.mrb[0].mxu0
        %v855 = vpop.f32.mrb[0].mxu0
        %856 = vdwg.mxu0
        %v857 = vadd.f32 %v803, %v852
        %858 = vrot.lane.b32.xlu0 %v503, 104
        %v859 = vpop.permute.xlu0 %858
        %860 = vrot.lane.b32.xlu0 %v624, 104
        %v861 = vpop.permute.xlu0 %860
        %v863 = vsel %vm507, %v859, 0
        %v866 = vsel %vm507, %v861, 0
        %868 = vmatprep.subr.bf16.mxu0 0
        %869 = vmatpush1.bf16.xpose.msra.mxu0 %v866
        %870 = vmatprep.subr.bf16.mxu0 0
        %871 = vmatpush1.bf16.xpose.msra.mxu0 0
        %872 = vmatprep.subr.bf16.mxu0 0
        %873 = vmatpush1.bf16.xpose.msra.mxu0 0
        %874 = vmatprep.subr.bf16.mxu0 0
        %875 = vmatpush1.bf16.xpose.msra.mxu0 0
        %876 = vmatprep.subr.bf16.mxu0 0
        %877 = vmatpush1.bf16.xpose.msra.mxu0 0
        %878 = vmatprep.subr.bf16.mxu0 0
        %879 = vmatpush1.bf16.xpose.msra.mxu0 0
        %880 = vmatprep.subr.bf16.mxu0 0
        %881 = vmatpush1.bf16.xpose.msra.mxu0 0
        %882 = vmatprep.subr.bf16.mxu0 0
        %883 = vmatpush1.bf16.xpose.msra.mxu0 0
        %884 = vmatprep.subr.bf16.mxu0 0
        %885 = vmatpush1.bf16.xpose.msra.mxu0 0
        %886 = vmatprep.subr.bf16.mxu0 0
        %887 = vmatpush1.bf16.xpose.msra.mxu0 0
        %888 = vmatprep.subr.bf16.mxu0 0
        %889 = vmatpush1.bf16.xpose.msra.mxu0 0
        %890 = vmatprep.subr.bf16.mxu0 0
        %891 = vmatpush1.bf16.xpose.msra.mxu0 0
        %892 = vmatprep.subr.bf16.mxu0 0
        %893 = vmatpush1.bf16.xpose.msra.mxu0 0
        %894 = vmatprep.subr.bf16.mxu0 0
        %895 = vmatpush1.bf16.xpose.msra.mxu0 0
        %896 = vmatprep.subr.bf16.mxu0 0
        %897 = vmatpush1.bf16.xpose.msra.mxu0 0
        %898 = vmatprep.subr.bf16.mxu0 0
        %899 = vmatpush1.bf16.xpose.msra.mxu0 0
        %900 = vmatprep.mubr.bf16.mxu0 0
        %901 = vmatmul.mubr.bf16.gmra.mrb[0].mxu0 %v863
        %v902 = vpop.f32.mrb[0].mxu0
        %v903 = vadd.f32 0.0, %v902
        %v904 = vpop.f32.mrb[0].mxu0
        %v905 = vpop.f32.mrb[0].mxu0
        %v906 = vpop.f32.mrb[0].mxu0
        %907 = vdwg.mxu0
        %v908 = vsel %vm507, %v903, -inf
        %909 = vmax.xlane.f32.xlu0 %v908
        %v910 = vpop.xlane.xlu0 %909
        %v911 = vsub.f32 -inf, %v910
        %v912 = vmul.f32 %v911, 1.442695
        %v913 = vpow.pop %v912
        %v914 = vsub.f32 %v903, %v910
        %v915 = vpack.c.bf16 %v914, %v914
        %v917 = vmul.bf16 %v915, 1069105081
        %v918 = vpow.bf16.pop %v917
        %v919 = vmul.f32 %v913, 0.0
        %v920 = vunpack.c.l.bf16 %v918
        %v921 = vsel %vm507, %v920, 0.0
        %922 = vadd.xlane.f32.xlu0 %v921
        %v923 = vpop.xlane.xlu0 %922
        %v924 = vadd.f32 %v919, %v923
        %925 = vrot.lane.b32.xlu0 %v692, 104
        %v926 = vpop.permute.xlu0 %925
        %v928 = vsel %vm507, %v918, 0
        %v931 = vsel %vm574, %v926, 0
        %933 = vmatprep.subr.bf16.mxu0 0
        %934 = vmatpush1.bf16.msra.mxu0 %v931
        %935 = vmatprep.subr.bf16.mxu0 0
        %936 = vmatpush1.bf16.msra.mxu0 0
        %937 = vmatprep.subr.bf16.mxu0 0
        %938 = vmatpush1.bf16.msra.mxu0 0
        %939 = vmatprep.subr.bf16.mxu0 0
        %940 = vmatpush1.bf16.msra.mxu0 0
        %941 = vmatprep.subr.bf16.mxu0 0
        %942 = vmatpush1.bf16.msra.mxu0 0
        %943 = vmatprep.subr.bf16.mxu0 0
        %944 = vmatpush1.bf16.msra.mxu0 0
        %945 = vmatprep.subr.bf16.mxu0 0
        %946 = vmatpush1.bf16.msra.mxu0 0
        %947 = vmatprep.subr.bf16.mxu0 0
        %948 = vmatpush1.bf16.msra.mxu0 0
        %949 = vmatprep.subr.bf16.mxu0 0
        %950 = vmatpush1.bf16.msra.mxu0 0
        %951 = vmatprep.subr.bf16.mxu0 0
        %952 = vmatpush1.bf16.msra.mxu0 0
        %953 = vmatprep.subr.bf16.mxu0 0
        %954 = vmatpush1.bf16.msra.mxu0 0
        %955 = vmatprep.subr.bf16.mxu0 0
        %956 = vmatpush1.bf16.msra.mxu0 0
        %957 = vmatprep.subr.bf16.mxu0 0
        %958 = vmatpush1.bf16.msra.mxu0 0
        %959 = vmatprep.subr.bf16.mxu0 0
        %960 = vmatpush1.bf16.msra.mxu0 0
        %961 = vmatprep.subr.bf16.mxu0 0
        %962 = vmatpush1.bf16.msra.mxu0 0
        %963 = vmatprep.subr.bf16.mxu0 0
        %964 = vmatpush1.bf16.msra.mxu0 0
        %965 = vmatprep.mubr.bf16.mxu0 0
        %966 = vmatmul.mubr.bf16.gmra.mrb[0].mxu0 %v928
        %v967 = vpop.f32.mrb[0].mxu0
        %v968 = vadd.f32 0.0, %v967
        %v969 = vpop.f32.mrb[0].mxu0
        %v970 = vpop.f32.mrb[0].mxu0
        %v971 = vpop.f32.mrb[0].mxu0
        %972 = vdwg.mxu0
        %v973 = vadd.f32 %v919, %v968
        %v974 = vrcp.pop %v570
        %v975 = vmul.f32 %v618, %v974
        %v976 = vpack.c.bf16 %v975, %v975
        %vm977 = vcmask 60416
        %978 = vst.msk [vmem:[#allocation3] sm:$0xf] %vm977, %v976
        %v979 = vrcp.pop %v689
        %v980 = vmul.f32 %v741, %v979
        %v981 = vpack.c.bf16 %v980, %v980
        %v983 = vunpack.c.l.b16 %v981
        %v984 = vpack.c.b16 %v983, %v983
        %985 = vrot.lane.b32.xlu0 %v984, 8
        %v986 = vpop.permute.xlu0 %985
        %vm988 = vcmask 126016
        %989 = vst.msk [vmem:[#allocation3] sm:$0xf] %vm988, %v986
        %v990 = vrcp.pop %v808
        %v991 = vmul.f32 %v857, %v990
        %v992 = vpack.c.bf16 %v991, %v991
        %v994 = vunpack.c.l.b16 %v992
        %v995 = vpack.c.b16 %v994, %v994
        %996 = vrot.lane.b32.xlu0 %v995, 16
        %v997 = vpop.permute.xlu0 %996
        %vm999 = vcmask 191616
        %1000 = vst.msk [vmem:[#allocation3] sm:$0xf] %vm999, %v997
        %v1001 = vrcp.pop %v924
        %v1002 = vmul.f32 %v973, %v1001
        %v1003 = vpack.c.bf16 %v1002, %v1002
        %v1005 = vunpack.c.l.b16 %v1003
        %v1006 = vpack.c.b16 %v1005, %v1005
        %1007 = vrot.lane.b32.xlu0 %v1006, 24
        %v1008 = vpop.permute.xlu0 %1007
        %vm1010 = vcmask 257216
        %1011 = vst.msk [vmem:[#allocation3] sm:$0xf] %vm1010, %v1008
        %v1012 = vld [vmem:[#allocation3] sm:$0xf]
        %v1013 = vld [vmem:[#allocation9] sm:$0xf]
        %v1014 = vld [vmem:[#allocation9 + $0x4] sm:$0xf]
        %v1015 = vld [vmem:[#allocation9 + $0x8] sm:$0xf]
        %v1016 = vld [vmem:[#allocation9 + $0xc] sm:$0xf]
        %v1017 = vld [vmem:[%s4] sm:$0x1]
        %v1019 = vlaneseq
        %v1020 = vshrl.u32 %v1019, 7
        %v1021 = vsub.s32 0, %v1020
        %v1022 = vrot.slane %v1017, %v1021
        %v1028 = vunpack.c.l.b16 %v1013
        %v1029 = vunpack.c.l.b16 %v1014
        %v1030 = vunpack.c.l.b16 %v1015
        %v1031 = vunpack.c.l.b16 %v1016
        %v1032 = vpack.c.b16 %v1029, %v1028
        %v1033 = vpack.c.b16 %v1031, %v1030
        %v1037 = vsel %vm458, %v1012, 0
        %1039 = vmatprep.subr.bf16.mxu0 0
        %1040 = vmatpush1.bf16.msra.mxu0 %v1032
        %1041 = vmatprep.subr.bf16.mxu0 0
        %1042 = vmatpush1.bf16.msra.mxu0 %v1033
        %1043 = vmatprep.subr.bf16.mxu0 0
        %1044 = vmatpush1.bf16.msra.mxu0 0
        %1045 = vmatprep.subr.bf16.mxu0 0
        %1046 = vmatpush1.bf16.msra.mxu0 0
        %1047 = vmatprep.subr.bf16.mxu0 0
        %1048 = vmatpush1.bf16.msra.mxu0 0
        %1049 = vmatprep.subr.bf16.mxu0 0
        %1050 = vmatpush1.bf16.msra.mxu0 0
        %1051 = vmatprep.subr.bf16.mxu0 0
        %1052 = vmatpush1.bf16.msra.mxu0 0
        %1053 = vmatprep.subr.bf16.mxu0 0
        %1054 = vmatpush1.bf16.msra.mxu0 0
        %1055 = vmatprep.subr.bf16.mxu0 0
        %1056 = vmatpush1.bf16.msra.mxu0 0
        %1057 = vmatprep.subr.bf16.mxu0 0
        %1058 = vmatpush1.bf16.msra.mxu0 0
        %1059 = vmatprep.subr.bf16.mxu0 0
        %1060 = vmatpush1.bf16.msra.mxu0 0
        %1061 = vmatprep.subr.bf16.mxu0 0
        %1062 = vmatpush1.bf16.msra.mxu0 0
        %1063 = vmatprep.subr.bf16.mxu0 0
        %1064 = vmatpush1.bf16.msra.mxu0 0
        %1065 = vmatprep.subr.bf16.mxu0 0
        %1066 = vmatpush1.bf16.msra.mxu0 0
        %1067 = vmatprep.subr.bf16.mxu0 0
        %1068 = vmatpush1.bf16.msra.mxu0 0
        %1069 = vmatprep.subr.bf16.mxu0 0
        %1070 = vmatpush1.bf16.msra.mxu0 0
        %1071 = vmatprep.mubr.bf16.mxu0 0
        %1072 = vmatmul.mubr.bf16.gmra.mrb[0].mxu0 %v1037
        %v1073 = vpop.f32.mrb[0].mxu0
        %v1074 = vadd.f32 %v1022, %v1073
        %v1075 = vpop.f32.mrb[0].mxu0
        %v1076 = vpop.f32.mrb[0].mxu0
        %v1077 = vpop.f32.mrb[0].mxu0
        %1078 = vdwg.mxu0
        %1079 = vst.msk [vmem:[%s282] sm:$0xff] %vm458, %v1074
        %s1080 = sand.u32 %s155, 1
        %s1081 = scalar_lea.sflag [#allocation6], %s1080
        %s1082 = sand.u32 %s155, 1
        %s1083 = smul.addr %s1082, 8
        %s1084 = scalar_lea.vmem [#allocation10], %s1083
        // Predicated region
        $region57: #{tpu_custom_call.1} parent=39 // pred_check
          %p1085 = pneg %p165
        $region58: #{tpu_custom_call.1} parent=39 // pred_check_branch
          %1087 = sbr.rel (%p1085) target = $region60
        $region59: #{tpu_custom_call.1} parent=39 // pred_region
          %s1089 = ssub.s32 128, 128
          %1090 = vsyncadd %s1081, %s1089
          %s1091 = sadd.s32 %s28, %s27
          %s1092 = smul.addr %s1091, 128
          %s1093 = scalar_lea.hbm %s5, %s1092
          %s1095 = sshll.u32 %s1084, 4
          %s1096 = int_to_ptr.vmem [resolvable:$true] %s1095
          %1098 = dma.vmem_to_hbm [thread:$0]  %s1096, 128, %s1093, %s1081
        $region60: #{tpu_custom_call.1} parent=39 // pred_fallthru
          _
      $region40: #{tpu_custom_call.1} parent=5 // pred_fallthru
        _
      %p1099 = scmp.le.s32.totalorder 2, %s18
      // Predicated region
      $region61: #{tpu_custom_call.1} parent=5 // pred_check
        %p1100 = pneg %p1099
      $region62: #{tpu_custom_call.1} parent=5 // pred_check_branch
        %1102 = sbr.rel (%p1100) target = $region64
      $region63: #{tpu_custom_call.1} parent=5 // pred_region
        %s1103 = ssub.s32 %s18, 2
        // Predicated region
        $region65: #{tpu_custom_call.1} parent=63 // pred_check
          %p1104 = pneg %p171
        $region66: #{tpu_custom_call.1} parent=63 // pred_check_branch
          %1106 = sbr.rel (%p1104) target = $region68
        $region67: #{tpu_custom_call.1} parent=63 // pred_region
          %s1107 = sand.u32 %s156, 1
          %s1108 = scalar_lea.sflag [#allocation6], %s1107
          %s1109 = sand.u32 %s156, 1
          %s1110 = smul.addr %s1109, 8
          %s1111 = scalar_lea.vmem [#allocation10], %s1110
          %1112 = dma.done %s1108, 128
        $region68: #{tpu_custom_call.1} parent=63 // pred_fallthru
          _
      $region64: #{tpu_custom_call.1} parent=5 // pred_fallthru
        _
    $region6: #{tpu_custom_call.1} parent=1 // loop_footer
      %s22 = sadd.s32 1, %s18
    $region7: #{tpu_custom_call.1} parent=1 // loop_footer_branch
      %17 = sbr.rel target = $region3
    $region8: #{tpu_custom_call.1} parent=1 // loop_exit
      _
    %1113 = vsyncpa [#allocation5], 1
    %s1114 = scalar_lea.sflag [#allocation5], 1
    %1115 = vsyncpa %s1114, 1
    %1116 = vsyncpa [#allocation8], 1
    %1117 = vsyncpa [#allocation6], 1
    %s1118 = scalar_lea.sflag [#allocation6], 1
    %1119 = vsyncpa %s1118, 1

</llo_original>
